<compile_context>
chip_gen: v5e
topology: v5e:2x2
jax: 0.10.0
libtpu: 0.0.40
codegen_flags: <defaults>
</compile_context>

<pallas_src>
import math
import functools

import jax
import jax.numpy as jnp
from jax.experimental import pallas as pl
from jax.experimental.pallas import tpu as pltpu


def _layernorm(x, gamma, beta, eps=1e-5):
    mean = jnp.mean(x, axis=-1, keepdims=True)
    var = jnp.mean(jnp.square(x - mean), axis=-1, keepdims=True)
    return (x - mean) * jax.lax.rsqrt(var + eps) * gamma + beta


def encoder_stack_kernel(num_heads,
                         x0_ref,          # (B, S, D) f32: emb*sqrt(D)+PE (aliased to out)
                         mask_ref,        # (B, 1, S) f32 additive key mask (0 / -1e6)
                         wqkv_ref,        # (1, D, 3D) bf16, Q cols pre-scaled by 1/sqrt(dh)
                         wo_ref,          # (1, D, D) bf16
                         g1_ref, b1_ref,  # (1, 1, D) f32  LayerNorm 1
                         w1_ref, fb1_ref, # (1, D, F) bf16, (1, 1, F) f32  FFN dense1
                         w2_ref, fb2_ref, # (1, F, D) bf16, (1, 1, D) f32  FFN dense2
                         g2_ref, b2_ref,  # (1, 1, D) f32  LayerNorm 2
                         out_ref):        # (B, S, D) f32: resident activation / output
    l = pl.program_id(0)
    B, S, D = out_ref.shape
    H = num_heads
    dh = D // H

    # Layer 0: seed the resident activation. out_ref's constant index_map keeps
    # the block in VMEM across the whole "arbitrary" layer axis; HBM writeback
    # happens once, after the last grid step.
    @pl.when(l == 0)
    def _():
        out_ref[...] = x0_ref[...]

    x = out_ref[...]                                     # (B, S, D) f32
    x2d = x.reshape(B * S, D)                            # fold batch into rows
    mask = mask_ref[...]                                 # (B, 1, S) additive

    # ---- multi-head attention: fused QKV matmul (bf16 weights, f32 acc) ----
    qkv = jnp.dot(x2d.astype(jnp.bfloat16), wqkv_ref[0],
                  preferred_element_type=jnp.float32)    # (B*S, 3D) f32

    # TODO(synk): fully head-batched 'bhqd,bhkd->bhqk' needs a 4-D transpose /
    # multi-batch-dim dot_general; kept as a static H-loop for robust Mosaic
    # lowering (the QK^T / PV matmuls are K=dh per head either way).
    head_outs = []
    for h in range(H):                                   # static unroll over heads
        qh = qkv[:, h * dh:(h + 1) * dh].reshape(B, S, dh).astype(jnp.bfloat16)
        kh = qkv[:, D + h * dh:D + (h + 1) * dh].reshape(B, S, dh).astype(jnp.bfloat16)
        vh = qkv[:, 2 * D + h * dh:2 * D + (h + 1) * dh].reshape(B, S, dh).astype(jnp.bfloat16)
        s = jnp.einsum('bqd,bkd->bqk', qh, kh,
                       preferred_element_type=jnp.float32)   # scale folded into W_q
        s = s + mask                                         # masked_softmax
        s = s - jnp.max(s, axis=-1, keepdims=True)
        p = jnp.exp(s)
        p = p * pl.reciprocal(jnp.sum(p, axis=-1, keepdims=True), approx=True)
        head_outs.append(jnp.einsum('bqk,bkd->bqd', p.astype(jnp.bfloat16), vh,
                                    preferred_element_type=jnp.float32))
    # Concat heads -> single dense W_o matmul (full K = D MXU pass, no per-head
    # accumulation adds).
    attn = jnp.concatenate(head_outs, axis=-1).reshape(B * S, D)
    attn2d = jnp.dot(attn.astype(jnp.bfloat16), wo_ref[0],
                     preferred_element_type=jnp.float32)

    # ---- AddNorm 1 (dropout = identity) ----
    y2d = _layernorm(x2d + attn2d, g1_ref[0], b1_ref[0])

    # ---- position-wise FFN ----
    h1 = jnp.maximum(
        jnp.dot(y2d.astype(jnp.bfloat16), w1_ref[0],
                preferred_element_type=jnp.float32) + fb1_ref[0], 0.0)
    ffn = jnp.dot(h1.astype(jnp.bfloat16), w2_ref[0],
                  preferred_element_type=jnp.float32) + fb2_ref[0]

    # ---- AddNorm 2 ----
    z2d = _layernorm(y2d + ffn, g2_ref[0], b2_ref[0])

    # Written every step; the resident output block means HBM only ever sees
    # the final layer's value.
    out_ref[...] = z2d.reshape(B, S, D)


@functools.partial(jax.jit, static_argnums=(4,))
def transformer_encoder_forward(tokens, valid_lens, emb_w, stacked, num_heads):
    B, S = tokens.shape
    D = emb_w.shape[1]
    L, _, F = stacked["w1"].shape

    # TODO(synk): the embedding token gather has no clean Pallas equivalent at
    # this size (dynamic per-token row gather); kept as emb_w[tokens] in XLA.
    # Scale * sqrt(D) + positional encoding are fused here (one elementwise op)
    # and the resulting buffer is aliased into the kernel output.
    x0 = (emb_w[tokens] * math.sqrt(D)
          + positional_encoding(S, D)[None]).astype(jnp.float32)     # (B, S, D)

    # Additive key mask (d2l masked_softmax, 1-D per-sequence valid_lens).
    col = jnp.arange(S, dtype=jnp.int32)[None, None, :]               # (1, 1, S)
    mask = jnp.where(col < valid_lens.astype(jnp.int32)[:, None, None],
                     0.0, -1e6).astype(jnp.float32)                   # (B, 1, S)

    kernel = functools.partial(encoder_stack_kernel, num_heads)

    const3 = lambda l: (0, 0, 0)
    per_layer3 = lambda l: (l, 0, 0)

    # VMEM budget: 2x (double-buffered) per-layer bf16 weights + resident
    # activation + x0 + FFN hidden, with 4x headroom; clamped to [32, 100] MiB
    # so the same config stays under v7x's 64 MiB physical VMEM at toy sizes.
    w_bytes = (D * 3 * D + D * D + D * F + F * D) * 2 + (4 * D + 2 * F) * 4
    act_bytes = B * S * D * 4
    hid_bytes = B * S * F * 4
    vmem_limit = int(min(max(4 * (2 * w_bytes + 3 * act_bytes + 2 * hid_bytes),
                             32 * 1024 * 1024), 100 * 1024 * 1024))

    grid_spec = pltpu.PrefetchScalarGridSpec(
        num_scalar_prefetch=0,
        grid=(L,),                                       # sequential layer axis
        in_specs=[
            pl.BlockSpec((B, S, D), const3),             # x0 (consumed at l==0)
            pl.BlockSpec((B, 1, S), const3),             # additive key mask
            pl.BlockSpec((1, D, 3 * D), per_layer3),     # fused W_qkv (bf16)
            pl.BlockSpec((1, D, D), per_layer3),         # W_o (bf16)
            pl.BlockSpec((1, 1, D), per_layer3),         # LN1 gamma
            pl.BlockSpec((1, 1, D), per_layer3),         # LN1 beta
            pl.BlockSpec((1, D, F), per_layer3),         # FFN W1 (bf16)
            pl.BlockSpec((1, 1, F), per_layer3),         # FFN b1
            pl.BlockSpec((1, F, D), per_layer3),         # FFN W2 (bf16)
            pl.BlockSpec((1, 1, D), per_layer3),         # FFN b2
            pl.BlockSpec((1, 1, D), per_layer3),         # LN2 gamma
            pl.BlockSpec((1, 1, D), per_layer3),         # LN2 beta
        ],
        out_specs=pl.BlockSpec((B, S, D), const3),       # resident across layers
    )
    # TODO(synk): on v7x (2 TensorCores) at real sizes, add a leading "parallel"
    # grid axis tiling B*S rows in 128/256-row tiles; pointless at B*S=16.
    return pl.pallas_call(
        kernel,
        out_shape=jax.ShapeDtypeStruct((B, S, D), jnp.float32),
        grid_spec=grid_spec,
        input_output_aliases={0: 0},                     # x0 HBM buffer reused as output
        compiler_params=pltpu.CompilerParams(
            dimension_semantics=("arbitrary",),          # layers are sequential
            vmem_limit_bytes=vmem_limit),
    )(x0, mask,
      stacked["wqkv"], stacked["wo"],
      stacked["ln1_g"], stacked["ln1_b"],
      stacked["w1"], stacked["b1"],
      stacked["w2"], stacked["b2"],
      stacked["ln2_g"], stacked["ln2_b"])


def init_block_params(key, D, F):
    ks = jax.random.split(key, 6)
    n = lambda k, s: jax.random.normal(k, s, jnp.float32) * 0.1
    return dict(
        wq=n(ks[0], (D, D)), wk=n(ks[1], (D, D)), wv=n(ks[2], (D, D)), wo=n(ks[3], (D, D)),
        ln1_g=jnp.ones((D,), jnp.float32), ln1_b=jnp.zeros((D,), jnp.float32),
        w1=n(ks[4], (D, F)), b1=jnp.zeros((F,), jnp.float32),
        w2=n(ks[5], (F, D)), b2=jnp.zeros((D,), jnp.float32),
        ln2_g=jnp.ones((D,), jnp.float32), ln2_b=jnp.zeros((D,), jnp.float32),
    )


def stack_layer_params(blocks, num_heads):
    """Stack per-layer params along a leading layer axis.

    Fuses QKV into one (D,3D) weight with the 1/sqrt(dh) attention scale folded
    into the Q columns; matmul weights are stored in bf16 (halves DMA + VMEM),
    LayerNorm/bias params stay f32.
    """
    D = blocks[0]["wq"].shape[0]
    dh = D // num_heads
    inv = 1.0 / math.sqrt(dh)
    st = lambda name: jnp.stack([p[name] for p in blocks])
    wqkv = jnp.stack([jnp.concatenate([p["wq"] * inv, p["wk"], p["wv"]], axis=1)
                      for p in blocks]).astype(jnp.bfloat16)                # (L, D, 3D)
    return dict(
        wqkv=wqkv,
        wo=st("wo").astype(jnp.bfloat16),                                   # (L, D, D)
        ln1_g=st("ln1_g")[:, None, :], ln1_b=st("ln1_b")[:, None, :],       # (L, 1, D)
        w1=st("w1").astype(jnp.bfloat16), b1=st("b1")[:, None, :],          # (L, D, F), (L, 1, F)
        w2=st("w2").astype(jnp.bfloat16), b2=st("b2")[:, None, :],          # (L, F, D), (L, 1, D)
        ln2_g=st("ln2_g")[:, None, :], ln2_b=st("ln2_b")[:, None, :],
    )


def positional_encoding(S, D):
    pos = jnp.arange(S, dtype=jnp.float32)[:, None]
    div = jnp.power(10000.0, jnp.arange(0, D, 2, dtype=jnp.float32) / D)
    ang = pos / div                                      # (S, D//2)
    P = jnp.zeros((S, D), jnp.float32)
    P = P.at[:, 0::2].set(jnp.sin(ang))
    P = P.at[:, 1::2].set(jnp.cos(ang))
    return P


if __name__ == "__main__":
    vocab_size = 20
    num_hiddens = 32       # key_size = query_size = value_size = num_hiddens
    num_heads = 4
    ffn_num_hiddens = 64
    num_layers = 2
    B, S = 2, 8

    key = jax.random.PRNGKey(0)
    k_tok, k_emb, k_par = jax.random.split(key, 3)
    tokens = jax.random.randint(k_tok, (B, S), 0, vocab_size, dtype=jnp.int32)
    valid_lens = jnp.array([8, 5], dtype=jnp.int32)
    emb_w = jax.random.normal(k_emb, (vocab_size, num_hiddens), jnp.float32)
    blocks = [init_block_params(jax.random.fold_in(k_par, i), num_hiddens, ffn_num_hiddens)
              for i in range(num_layers)]
    stacked = stack_layer_params(blocks, num_heads)

    out = transformer_encoder_forward(tokens, valid_lens, emb_w, stacked, num_heads)
    out = jax.block_until_ready(out)
    assert out.shape == (B, S, num_hiddens)
    print("KERNEL_OK")
</pallas_src>

<mosaic_0001>
module attributes {stable_mosaic.version = 11 : i64} {
  func.func @encoder_stack_kernel(%arg0: i32, %arg1: memref<2x8x32xf32, #tpu.memory_space<vmem>>, %arg2: memref<2x1x8xf32, #tpu.memory_space<vmem>>, %arg3: memref<1x32x96xbf16, #tpu.memory_space<vmem>>, %arg4: memref<1x32x32xbf16, #tpu.memory_space<vmem>>, %arg5: memref<1x1x32xf32, #tpu.memory_space<vmem>>, %arg6: memref<1x1x32xf32, #tpu.memory_space<vmem>>, %arg7: memref<1x32x64xbf16, #tpu.memory_space<vmem>>, %arg8: memref<1x1x64xf32, #tpu.memory_space<vmem>>, %arg9: memref<1x64x32xbf16, #tpu.memory_space<vmem>>, %arg10: memref<1x1x32xf32, #tpu.memory_space<vmem>>, %arg11: memref<1x1x32xf32, #tpu.memory_space<vmem>>, %arg12: memref<1x1x32xf32, #tpu.memory_space<vmem>>, %arg13: memref<2x8x32xf32, #tpu.memory_space<vmem>>) attributes {dimension_semantics = [#tpu.dimension_semantics<arbitrary>], iteration_bounds = array<i64: 2>, scalar_prefetch = 0 : i64, scratch_operands = 0 : i64, tpu.core_type = #tpu.core_type<tc>, window_params = [{pipeline_mode = #tpu.pipeline_mode<synchronous>, transform_indices = @transform_0, window_bounds = array<i64: 2, 8, 32>}, {pipeline_mode = #tpu.pipeline_mode<synchronous>, transform_indices = @transform_1, window_bounds = array<i64: 2, 1, 8>}, {transform_indices = @transform_2, window_bounds = array<i64: 1, 32, 96>}, {transform_indices = @transform_3, window_bounds = array<i64: 1, 32, 32>}, {transform_indices = @transform_4, window_bounds = array<i64: 1, 1, 32>}, {transform_indices = @transform_5, window_bounds = array<i64: 1, 1, 32>}, {transform_indices = @transform_6, window_bounds = array<i64: 1, 32, 64>}, {transform_indices = @transform_7, window_bounds = array<i64: 1, 1, 64>}, {transform_indices = @transform_8, window_bounds = array<i64: 1, 64, 32>}, {transform_indices = @transform_9, window_bounds = array<i64: 1, 1, 32>}, {transform_indices = @transform_10, window_bounds = array<i64: 1, 1, 32>}, {transform_indices = @transform_11, window_bounds = array<i64: 1, 1, 32>}, {pipeline_mode = #tpu.pipeline_mode<synchronous>, transform_indices = @transform_12, window_bounds = array<i64: 2, 8, 32>}]} {
    %c0_i32 = arith.constant 0 : i32
    %0 = arith.cmpi eq, %arg0, %c0_i32 : i32
    %1 = arith.extui %0 : i1 to i32
    %c0_i32_0 = arith.constant 0 : i32
    %2 = arith.cmpi ne, %1, %c0_i32_0 : i32
    scf.if %2 {
      %c0_69 = arith.constant 0 : index
      %c0_70 = arith.constant 0 : index
      %c0_71 = arith.constant 0 : index
      %186 = vector.load %arg1[%c0_69, %c0_70, %c0_71] : memref<2x8x32xf32, #tpu.memory_space<vmem>>, vector<2x8x32xf32>
      %c0_72 = arith.constant 0 : index
      %c0_73 = arith.constant 0 : index
      %c0_74 = arith.constant 0 : index
      %187 = vector.load %arg13[%c0_72, %c0_73, %c0_74] : memref<2x8x32xf32, #tpu.memory_space<vmem>>, vector<2x8x32xf32>
      tpu.vector_store %arg13[%c0_72, %c0_73, %c0_74], %186 {strides = array<i32>} : memref<2x8x32xf32, #tpu.memory_space<vmem>>, vector<2x8x32xf32>,
    } else {
    }
    %c0 = arith.constant 0 : index
    %c0_1 = arith.constant 0 : index
    %c0_2 = arith.constant 0 : index
    %3 = vector.load %arg13[%c0, %c0_1, %c0_2] : memref<2x8x32xf32, #tpu.memory_space<vmem>>, vector<2x8x32xf32>
    %4 = vector.shape_cast %3 : vector<2x8x32xf32> to vector<16x32xf32>
    %c0_3 = arith.constant 0 : index
    %c0_4 = arith.constant 0 : index
    %c0_5 = arith.constant 0 : index
    %5 = vector.load %arg2[%c0_3, %c0_4, %c0_5] : memref<2x1x8xf32, #tpu.memory_space<vmem>>, vector<2x1x8xf32>
    %6 = arith.truncf %4 : vector<16x32xf32> to vector<16x32xbf16>
    %c0_6 = arith.constant 0 : index
    %c0_7 = arith.constant 0 : index
    %c0_8 = arith.constant 0 : index
    %7 = vector.load %arg3[%c0_6, %c0_7, %c0_8] : memref<1x32x96xbf16, #tpu.memory_space<vmem>>, vector<1x32x96xbf16>
    %8 = vector.shape_cast %7 : vector<1x32x96xbf16> to vector<32x96xbf16>
    %cst = arith.constant dense<0.000000e+00> : vector<16x96xf32>
    %9 = tpu.matmul %6, %8, %cst {dimension_numbers = #tpu.dot_dimension_numbers<[1], [0], [0], [1], [0, 0, 1, 1], [], []>} : vector<16x32xbf16>, vector<32x96xbf16>, vector<16x96xf32> -> vector<16x96xf32>
    %10 = vector.extract_strided_slice %9 {offsets = [0, 0], sizes = [16, 8], strides = [1, 1]} : vector<16x96xf32> to vector<16x8xf32>
    %11 = vector.shape_cast %10 : vector<16x8xf32> to vector<2x8x8xf32>
    %12 = arith.truncf %11 : vector<2x8x8xf32> to vector<2x8x8xbf16>
    %13 = vector.extract_strided_slice %9 {offsets = [0, 32], sizes = [16, 8], strides = [1, 1]} : vector<16x96xf32> to vector<16x8xf32>
    %14 = vector.shape_cast %13 : vector<16x8xf32> to vector<2x8x8xf32>
    %15 = arith.truncf %14 : vector<2x8x8xf32> to vector<2x8x8xbf16>
    %16 = vector.extract_strided_slice %9 {offsets = [0, 64], sizes = [16, 8], strides = [1, 1]} : vector<16x96xf32> to vector<16x8xf32>
    %17 = vector.shape_cast %16 : vector<16x8xf32> to vector<2x8x8xf32>
    %18 = arith.truncf %17 : vector<2x8x8xf32> to vector<2x8x8xbf16>
    "tpu.trace_start"() <{level = 10 : i32, message = "bqd,bkd->bqk"}> : () -> ()
    %cst_9 = arith.constant dense<0.000000e+00> : vector<2x8x8xf32>
    %19 = tpu.matmul %12, %15, %cst_9 {dimension_numbers = #tpu.dot_dimension_numbers<[2], [2], [1], [1], [0, 0, 0, 1, 1, 1], [0], [0]>} : vector<2x8x8xbf16>, vector<2x8x8xbf16>, vector<2x8x8xf32> -> vector<2x8x8xf32>
    "tpu.trace_stop"() : () -> ()
    %20 = vector.broadcast %5 : vector<2x1x8xf32> to vector<2x8x8xf32>
    %21 = arith.addf %19, %20 : vector<2x8x8xf32>
    %cst_10 = arith.constant dense<0xFF800000> : vector<2x8xf32>
    %22 = vector.multi_reduction <maximumf>, %21, %cst_10 [2] : vector<2x8x8xf32> to vector<2x8xf32>
    %23 = vector.shape_cast %22 : vector<2x8xf32> to vector<2x8x1xf32>
    %24 = vector.broadcast %23 : vector<2x8x1xf32> to vector<2x8x8xf32>
    %25 = arith.subf %21, %24 : vector<2x8x8xf32>
    %26 = math.exp %25 : vector<2x8x8xf32>
    %cst_11 = arith.constant dense<0.000000e+00> : vector<2x8xf32>
    %27 = vector.multi_reduction <add>, %26, %cst_11 [2] : vector<2x8x8xf32> to vector<2x8xf32>
    %28 = vector.shape_cast %27 : vector<2x8xf32> to vector<2x8x1xf32>
    %29 = tpu.reciprocal %28 {approx = true} : vector<2x8x1xf32> -> vector<2x8x1xf32>
    %30 = vector.broadcast %29 : vector<2x8x1xf32> to vector<2x8x8xf32>
    %31 = arith.mulf %26, %30 : vector<2x8x8xf32>
    %32 = arith.truncf %31 : vector<2x8x8xf32> to vector<2x8x8xbf16>
    "tpu.trace_start"() <{level = 10 : i32, message = "bqk,bkd->bqd"}> : () -> ()
    %cst_12 = arith.constant dense<0.000000e+00> : vector<2x8x8xf32>
    %33 = tpu.matmul %32, %18, %cst_12 {dimension_numbers = #tpu.dot_dimension_numbers<[2], [1], [1], [2], [0, 0, 0, 1, 1, 2], [0], [0]>} : vector<2x8x8xbf16>, vector<2x8x8xbf16>, vector<2x8x8xf32> -> vector<2x8x8xf32>
    "tpu.trace_stop"() : () -> ()
    %34 = vector.extract_strided_slice %9 {offsets = [0, 8], sizes = [16, 8], strides = [1, 1]} : vector<16x96xf32> to vector<16x8xf32>
    %35 = vector.shape_cast %34 : vector<16x8xf32> to vector<2x8x8xf32>
    %36 = arith.truncf %35 : vector<2x8x8xf32> to vector<2x8x8xbf16>
    %37 = vector.extract_strided_slice %9 {offsets = [0, 40], sizes = [16, 8], strides = [1, 1]} : vector<16x96xf32> to vector<16x8xf32>
    %38 = vector.shape_cast %37 : vector<16x8xf32> to vector<2x8x8xf32>
    %39 = arith.truncf %38 : vector<2x8x8xf32> to vector<2x8x8xbf16>
    %40 = vector.extract_strided_slice %9 {offsets = [0, 72], sizes = [16, 8], strides = [1, 1]} : vector<16x96xf32> to vector<16x8xf32>
    %41 = vector.shape_cast %40 : vector<16x8xf32> to vector<2x8x8xf32>
    %42 = arith.truncf %41 : vector<2x8x8xf32> to vector<2x8x8xbf16>
    "tpu.trace_start"() <{level = 10 : i32, message = "bqd,bkd->bqk"}> : () -> ()
    %cst_13 = arith.constant dense<0.000000e+00> : vector<2x8x8xf32>
    %43 = tpu.matmul %36, %39, %cst_13 {dimension_numbers = #tpu.dot_dimension_numbers<[2], [2], [1], [1], [0, 0, 0, 1, 1, 1], [0], [0]>} : vector<2x8x8xbf16>, vector<2x8x8xbf16>, vector<2x8x8xf32> -> vector<2x8x8xf32>
    "tpu.trace_stop"() : () -> ()
    %44 = vector.broadcast %5 : vector<2x1x8xf32> to vector<2x8x8xf32>
    %45 = arith.addf %43, %44 : vector<2x8x8xf32>
    %cst_14 = arith.constant dense<0xFF800000> : vector<2x8xf32>
    %46 = vector.multi_reduction <maximumf>, %45, %cst_14 [2] : vector<2x8x8xf32> to vector<2x8xf32>
    %47 = vector.shape_cast %46 : vector<2x8xf32> to vector<2x8x1xf32>
    %48 = vector.broadcast %47 : vector<2x8x1xf32> to vector<2x8x8xf32>
    %49 = arith.subf %45, %48 : vector<2x8x8xf32>
    %50 = math.exp %49 : vector<2x8x8xf32>
    %cst_15 = arith.constant dense<0.000000e+00> : vector<2x8xf32>
    %51 = vector.multi_reduction <add>, %50, %cst_15 [2] : vector<2x8x8xf32> to vector<2x8xf32>
    %52 = vector.shape_cast %51 : vector<2x8xf32> to vector<2x8x1xf32>
    %53 = tpu.reciprocal %52 {approx = true} : vector<2x8x1xf32> -> vector<2x8x1xf32>
    %54 = vector.broadcast %53 : vector<2x8x1xf32> to vector<2x8x8xf32>
    %55 = arith.mulf %50, %54 : vector<2x8x8xf32>
    %56 = arith.truncf %55 : vector<2x8x8xf32> to vector<2x8x8xbf16>
    "tpu.trace_start"() <{level = 10 : i32, message = "bqk,bkd->bqd"}> : () -> ()
    %cst_16 = arith.constant dense<0.000000e+00> : vector<2x8x8xf32>
    %57 = tpu.matmul %56, %42, %cst_16 {dimension_numbers = #tpu.dot_dimension_numbers<[2], [1], [1], [2], [0, 0, 0, 1, 1, 2], [0], [0]>} : vector<2x8x8xbf16>, vector<2x8x8xbf16>, vector<2x8x8xf32> -> vector<2x8x8xf32>
    "tpu.trace_stop"() : () -> ()
    %58 = vector.extract_strided_slice %9 {offsets = [0, 16], sizes = [16, 8], strides = [1, 1]} : vector<16x96xf32> to vector<16x8xf32>
    %59 = vector.shape_cast %58 : vector<16x8xf32> to vector<2x8x8xf32>
    %60 = arith.truncf %59 : vector<2x8x8xf32> to vector<2x8x8xbf16>
    %61 = vector.extract_strided_slice %9 {offsets = [0, 48], sizes = [16, 8], strides = [1, 1]} : vector<16x96xf32> to vector<16x8xf32>
    %62 = vector.shape_cast %61 : vector<16x8xf32> to vector<2x8x8xf32>
    %63 = arith.truncf %62 : vector<2x8x8xf32> to vector<2x8x8xbf16>
    %64 = vector.extract_strided_slice %9 {offsets = [0, 80], sizes = [16, 8], strides = [1, 1]} : vector<16x96xf32> to vector<16x8xf32>
    %65 = vector.shape_cast %64 : vector<16x8xf32> to vector<2x8x8xf32>
    %66 = arith.truncf %65 : vector<2x8x8xf32> to vector<2x8x8xbf16>
    "tpu.trace_start"() <{level = 10 : i32, message = "bqd,bkd->bqk"}> : () -> ()
    %cst_17 = arith.constant dense<0.000000e+00> : vector<2x8x8xf32>
    %67 = tpu.matmul %60, %63, %cst_17 {dimension_numbers = #tpu.dot_dimension_numbers<[2], [2], [1], [1], [0, 0, 0, 1, 1, 1], [0], [0]>} : vector<2x8x8xbf16>, vector<2x8x8xbf16>, vector<2x8x8xf32> -> vector<2x8x8xf32>
    "tpu.trace_stop"() : () -> ()
    %68 = vector.broadcast %5 : vector<2x1x8xf32> to vector<2x8x8xf32>
    %69 = arith.addf %67, %68 : vector<2x8x8xf32>
    %cst_18 = arith.constant dense<0xFF800000> : vector<2x8xf32>
    %70 = vector.multi_reduction <maximumf>, %69, %cst_18 [2] : vector<2x8x8xf32> to vector<2x8xf32>
    %71 = vector.shape_cast %70 : vector<2x8xf32> to vector<2x8x1xf32>
    %72 = vector.broadcast %71 : vector<2x8x1xf32> to vector<2x8x8xf32>
    %73 = arith.subf %69, %72 : vector<2x8x8xf32>
    %74 = math.exp %73 : vector<2x8x8xf32>
    %cst_19 = arith.constant dense<0.000000e+00> : vector<2x8xf32>
    %75 = vector.multi_reduction <add>, %74, %cst_19 [2] : vector<2x8x8xf32> to vector<2x8xf32>
    %76 = vector.shape_cast %75 : vector<2x8xf32> to vector<2x8x1xf32>
    %77 = tpu.reciprocal %76 {approx = true} : vector<2x8x1xf32> -> vector<2x8x1xf32>
    %78 = vector.broadcast %77 : vector<2x8x1xf32> to vector<2x8x8xf32>
    %79 = arith.mulf %74, %78 : vector<2x8x8xf32>
    %80 = arith.truncf %79 : vector<2x8x8xf32> to vector<2x8x8xbf16>
    "tpu.trace_start"() <{level = 10 : i32, message = "bqk,bkd->bqd"}> : () -> ()
    %cst_20 = arith.constant dense<0.000000e+00> : vector<2x8x8xf32>
    %81 = tpu.matmul %80, %66, %cst_20 {dimension_numbers = #tpu.dot_dimension_numbers<[2], [1], [1], [2], [0, 0, 0, 1, 1, 2], [0], [0]>} : vector<2x8x8xbf16>, vector<2x8x8xbf16>, vector<2x8x8xf32> -> vector<2x8x8xf32>
    "tpu.trace_stop"() : () -> ()
    %82 = vector.extract_strided_slice %9 {offsets = [0, 24], sizes = [16, 8], strides = [1, 1]} : vector<16x96xf32> to vector<16x8xf32>
    %83 = vector.shape_cast %82 : vector<16x8xf32> to vector<2x8x8xf32>
    %84 = arith.truncf %83 : vector<2x8x8xf32> to vector<2x8x8xbf16>
    %85 = vector.extract_strided_slice %9 {offsets = [0, 56], sizes = [16, 8], strides = [1, 1]} : vector<16x96xf32> to vector<16x8xf32>
    %86 = vector.shape_cast %85 : vector<16x8xf32> to vector<2x8x8xf32>
    %87 = arith.truncf %86 : vector<2x8x8xf32> to vector<2x8x8xbf16>
    %88 = vector.extract_strided_slice %9 {offsets = [0, 88], sizes = [16, 8], strides = [1, 1]} : vector<16x96xf32> to vector<16x8xf32>
    %89 = vector.shape_cast %88 : vector<16x8xf32> to vector<2x8x8xf32>
    %90 = arith.truncf %89 : vector<2x8x8xf32> to vector<2x8x8xbf16>
    "tpu.trace_start"() <{level = 10 : i32, message = "bqd,bkd->bqk"}> : () -> ()
    %cst_21 = arith.constant dense<0.000000e+00> : vector<2x8x8xf32>
    %91 = tpu.matmul %84, %87, %cst_21 {dimension_numbers = #tpu.dot_dimension_numbers<[2], [2], [1], [1], [0, 0, 0, 1, 1, 1], [0], [0]>} : vector<2x8x8xbf16>, vector<2x8x8xbf16>, vector<2x8x8xf32> -> vector<2x8x8xf32>
    "tpu.trace_stop"() : () -> ()
    %92 = vector.broadcast %5 : vector<2x1x8xf32> to vector<2x8x8xf32>
    %93 = arith.addf %91, %92 : vector<2x8x8xf32>
    %cst_22 = arith.constant dense<0xFF800000> : vector<2x8xf32>
    %94 = vector.multi_reduction <maximumf>, %93, %cst_22 [2] : vector<2x8x8xf32> to vector<2x8xf32>
    %95 = vector.shape_cast %94 : vector<2x8xf32> to vector<2x8x1xf32>
    %96 = vector.broadcast %95 : vector<2x8x1xf32> to vector<2x8x8xf32>
    %97 = arith.subf %93, %96 : vector<2x8x8xf32>
    %98 = math.exp %97 : vector<2x8x8xf32>
    %cst_23 = arith.constant dense<0.000000e+00> : vector<2x8xf32>
    %99 = vector.multi_reduction <add>, %98, %cst_23 [2] : vector<2x8x8xf32> to vector<2x8xf32>
    %100 = vector.shape_cast %99 : vector<2x8xf32> to vector<2x8x1xf32>
    %101 = tpu.reciprocal %100 {approx = true} : vector<2x8x1xf32> -> vector<2x8x1xf32>
    %102 = vector.broadcast %101 : vector<2x8x1xf32> to vector<2x8x8xf32>
    %103 = arith.mulf %98, %102 : vector<2x8x8xf32>
    %104 = arith.truncf %103 : vector<2x8x8xf32> to vector<2x8x8xbf16>
    "tpu.trace_start"() <{level = 10 : i32, message = "bqk,bkd->bqd"}> : () -> ()
    %cst_24 = arith.constant dense<0.000000e+00> : vector<2x8x8xf32>
    %105 = tpu.matmul %104, %90, %cst_24 {dimension_numbers = #tpu.dot_dimension_numbers<[2], [1], [1], [2], [0, 0, 0, 1, 1, 2], [0], [0]>} : vector<2x8x8xbf16>, vector<2x8x8xbf16>, vector<2x8x8xf32> -> vector<2x8x8xf32>
    "tpu.trace_stop"() : () -> ()
    %106 = tpu.concatenate %33, %57, %81, %105 in 2 : vector<2x8x8xf32>, vector<2x8x8xf32>, vector<2x8x8xf32>, vector<2x8x8xf32> -> vector<2x8x32xf32>
    %107 = vector.shape_cast %106 : vector<2x8x32xf32> to vector<16x32xf32>
    %108 = arith.truncf %107 : vector<16x32xf32> to vector<16x32xbf16>
    %c0_25 = arith.constant 0 : index
    %c0_26 = arith.constant 0 : index
    %c0_27 = arith.constant 0 : index
    %109 = vector.load %arg4[%c0_25, %c0_26, %c0_27] : memref<1x32x32xbf16, #tpu.memory_space<vmem>>, vector<1x32x32xbf16>
    %110 = vector.shape_cast %109 : vector<1x32x32xbf16> to vector<32x32xbf16>
    %cst_28 = arith.constant dense<0.000000e+00> : vector<16x32xf32>
    %111 = tpu.matmul %108, %110, %cst_28 {dimension_numbers = #tpu.dot_dimension_numbers<[1], [0], [0], [1], [0, 0, 1, 1], [], []>} : vector<16x32xbf16>, vector<32x32xbf16>, vector<16x32xf32> -> vector<16x32xf32>
    %112 = arith.addf %4, %111 : vector<16x32xf32>
    %c0_29 = arith.constant 0 : index
    %c0_30 = arith.constant 0 : index
    %c0_31 = arith.constant 0 : index
    %113 = vector.load %arg5[%c0_29, %c0_30, %c0_31] : memref<1x1x32xf32, #tpu.memory_space<vmem>>, vector<1x1x32xf32>
    %114 = vector.shape_cast %113 : vector<1x1x32xf32> to vector<1x32xf32>
    %c0_32 = arith.constant 0 : index
    %c0_33 = arith.constant 0 : index
    %c0_34 = arith.constant 0 : index
    %115 = vector.load %arg6[%c0_32, %c0_33, %c0_34] : memref<1x1x32xf32, #tpu.memory_space<vmem>>, vector<1x1x32xf32>
    %116 = vector.shape_cast %115 : vector<1x1x32xf32> to vector<1x32xf32>
    %cst_35 = arith.constant dense<0.000000e+00> : vector<16xf32>
    %117 = vector.multi_reduction <add>, %112, %cst_35 [1] : vector<16x32xf32> to vector<16xf32>
    %118 = vector.shape_cast %117 : vector<16xf32> to vector<16x1xf32>
    %cst_36 = arith.constant 3.200000e+01 : f32
    %119 = vector.broadcast %cst_36 : f32 to vector<16x1xf32>
    %120 = arith.divf %118, %119 : vector<16x1xf32>
    %121 = vector.broadcast %120 : vector<16x1xf32> to vector<16x32xf32>
    %122 = arith.subf %112, %121 : vector<16x32xf32>
    %123 = arith.mulf %122, %122 : vector<16x32xf32>
    %cst_37 = arith.constant dense<0.000000e+00> : vector<16xf32>
    %124 = vector.multi_reduction <add>, %123, %cst_37 [1] : vector<16x32xf32> to vector<16xf32>
    %125 = vector.shape_cast %124 : vector<16xf32> to vector<16x1xf32>
    %cst_38 = arith.constant 3.200000e+01 : f32
    %126 = vector.broadcast %cst_38 : f32 to vector<16x1xf32>
    %127 = arith.divf %125, %126 : vector<16x1xf32>
    %128 = vector.broadcast %120 : vector<16x1xf32> to vector<16x32xf32>
    %129 = arith.subf %112, %128 : vector<16x32xf32>
    %cst_39 = arith.constant 9.99999974E-6 : f32
    %130 = vector.broadcast %cst_39 : f32 to vector<16x1xf32>
    %131 = arith.addf %127, %130 : vector<16x1xf32>
    %132 = math.rsqrt %131 : vector<16x1xf32>
    %133 = vector.broadcast %132 : vector<16x1xf32> to vector<16x32xf32>
    %134 = arith.mulf %129, %133 : vector<16x32xf32>
    %135 = vector.broadcast %114 : vector<1x32xf32> to vector<16x32xf32>
    %136 = arith.mulf %134, %135 : vector<16x32xf32>
    %137 = vector.broadcast %116 : vector<1x32xf32> to vector<16x32xf32>
    %138 = arith.addf %136, %137 : vector<16x32xf32>
    %139 = arith.truncf %138 : vector<16x32xf32> to vector<16x32xbf16>
    %c0_40 = arith.constant 0 : index
    %c0_41 = arith.constant 0 : index
    %c0_42 = arith.constant 0 : index
    %140 = vector.load %arg7[%c0_40, %c0_41, %c0_42] : memref<1x32x64xbf16, #tpu.memory_space<vmem>>, vector<1x32x64xbf16>
    %141 = vector.shape_cast %140 : vector<1x32x64xbf16> to vector<32x64xbf16>
    %cst_43 = arith.constant dense<0.000000e+00> : vector<16x64xf32>
    %142 = tpu.matmul %139, %141, %cst_43 {dimension_numbers = #tpu.dot_dimension_numbers<[1], [0], [0], [1], [0, 0, 1, 1], [], []>} : vector<16x32xbf16>, vector<32x64xbf16>, vector<16x64xf32> -> vector<16x64xf32>
    %c0_44 = arith.constant 0 : index
    %c0_45 = arith.constant 0 : index
    %c0_46 = arith.constant 0 : index
    %143 = vector.load %arg8[%c0_44, %c0_45, %c0_46] : memref<1x1x64xf32, #tpu.memory_space<vmem>>, vector<1x1x64xf32>
    %144 = vector.shape_cast %143 : vector<1x1x64xf32> to vector<1x64xf32>
    %145 = vector.broadcast %144 : vector<1x64xf32> to vector<16x64xf32>
    %146 = arith.addf %142, %145 : vector<16x64xf32>
    %cst_47 = arith.constant 0.000000e+00 : f32
    %147 = vector.broadcast %cst_47 : f32 to vector<16x64xf32>
    %148 = arith.maximumf %146, %147 : vector<16x64xf32>
    %149 = arith.truncf %148 : vector<16x64xf32> to vector<16x64xbf16>
    %c0_48 = arith.constant 0 : index
    %c0_49 = arith.constant 0 : index
    %c0_50 = arith.constant 0 : index
    %150 = vector.load %arg9[%c0_48, %c0_49, %c0_50] : memref<1x64x32xbf16, #tpu.memory_space<vmem>>, vector<1x64x32xbf16>
    %151 = vector.shape_cast %150 : vector<1x64x32xbf16> to vector<64x32xbf16>
    %cst_51 = arith.constant dense<0.000000e+00> : vector<16x32xf32>
    %152 = tpu.matmul %149, %151, %cst_51 {dimension_numbers = #tpu.dot_dimension_numbers<[1], [0], [0], [1], [0, 0, 1, 1], [], []>} : vector<16x64xbf16>, vector<64x32xbf16>, vector<16x32xf32> -> vector<16x32xf32>
    %c0_52 = arith.constant 0 : index
    %c0_53 = arith.constant 0 : index
    %c0_54 = arith.constant 0 : index
    %153 = vector.load %arg10[%c0_52, %c0_53, %c0_54] : memref<1x1x32xf32, #tpu.memory_space<vmem>>, vector<1x1x32xf32>
    %154 = vector.shape_cast %153 : vector<1x1x32xf32> to vector<1x32xf32>
    %155 = vector.broadcast %154 : vector<1x32xf32> to vector<16x32xf32>
    %156 = arith.addf %152, %155 : vector<16x32xf32>
    %157 = arith.addf %138, %156 : vector<16x32xf32>
    %c0_55 = arith.constant 0 : index
    %c0_56 = arith.constant 0 : index
    %c0_57 = arith.constant 0 : index
    %158 = vector.load %arg11[%c0_55, %c0_56, %c0_57] : memref<1x1x32xf32, #tpu.memory_space<vmem>>, vector<1x1x32xf32>
    %159 = vector.shape_cast %158 : vector<1x1x32xf32> to vector<1x32xf32>
    %c0_58 = arith.constant 0 : index
    %c0_59 = arith.constant 0 : index
    %c0_60 = arith.constant 0 : index
    %160 = vector.load %arg12[%c0_58, %c0_59, %c0_60] : memref<1x1x32xf32, #tpu.memory_space<vmem>>, vector<1x1x32xf32>
    %161 = vector.shape_cast %160 : vector<1x1x32xf32> to vector<1x32xf32>
    %cst_61 = arith.constant dense<0.000000e+00> : vector<16xf32>
    %162 = vector.multi_reduction <add>, %157, %cst_61 [1] : vector<16x32xf32> to vector<16xf32>
    %163 = vector.shape_cast %162 : vector<16xf32> to vector<16x1xf32>
    %cst_62 = arith.constant 3.200000e+01 : f32
    %164 = vector.broadcast %cst_62 : f32 to vector<16x1xf32>
    %165 = arith.divf %163, %164 : vector<16x1xf32>
    %166 = vector.broadcast %165 : vector<16x1xf32> to vector<16x32xf32>
    %167 = arith.subf %157, %166 : vector<16x32xf32>
    %168 = arith.mulf %167, %167 : vector<16x32xf32>
    %cst_63 = arith.constant dense<0.000000e+00> : vector<16xf32>
    %169 = vector.multi_reduction <add>, %168, %cst_63 [1] : vector<16x32xf32> to vector<16xf32>
    %170 = vector.shape_cast %169 : vector<16xf32> to vector<16x1xf32>
    %cst_64 = arith.constant 3.200000e+01 : f32
    %171 = vector.broadcast %cst_64 : f32 to vector<16x1xf32>
    %172 = arith.divf %170, %171 : vector<16x1xf32>
    %173 = vector.broadcast %165 : vector<16x1xf32> to vector<16x32xf32>
    %174 = arith.subf %157, %173 : vector<16x32xf32>
    %cst_65 = arith.constant 9.99999974E-6 : f32
    %175 = vector.broadcast %cst_65 : f32 to vector<16x1xf32>
    %176 = arith.addf %172, %175 : vector<16x1xf32>
    %177 = math.rsqrt %176 : vector<16x1xf32>
    %178 = vector.broadcast %177 : vector<16x1xf32> to vector<16x32xf32>
    %179 = arith.mulf %174, %178 : vector<16x32xf32>
    %180 = vector.broadcast %159 : vector<1x32xf32> to vector<16x32xf32>
    %181 = arith.mulf %179, %180 : vector<16x32xf32>
    %182 = vector.broadcast %161 : vector<1x32xf32> to vector<16x32xf32>
    %183 = arith.addf %181, %182 : vector<16x32xf32>
    %184 = vector.shape_cast %183 : vector<16x32xf32> to vector<2x8x32xf32>
    %c0_66 = arith.constant 0 : index
    %c0_67 = arith.constant 0 : index
    %c0_68 = arith.constant 0 : index
    %185 = vector.load %arg13[%c0_66, %c0_67, %c0_68] : memref<2x8x32xf32, #tpu.memory_space<vmem>>, vector<2x8x32xf32>
    tpu.vector_store %arg13[%c0_66, %c0_67, %c0_68], %184 {strides = array<i32>} : memref<2x8x32xf32, #tpu.memory_space<vmem>>, vector<2x8x32xf32>,
    return
  }
  func.func @transform_0(%arg0: i32) -> (i32, i32, i32) {
    %c0_i32 = arith.constant 0 : i32
    %c0_i32_0 = arith.constant 0 : i32
    %c0_i32_1 = arith.constant 0 : i32
    %c0_i32_2 = arith.constant 0 : i32
    return %c0_i32, %c0_i32_0, %c0_i32_1 : i32, i32, i32
  }
  func.func @transform_1(%arg0: i32) -> (i32, i32, i32) {
    %c0_i32 = arith.constant 0 : i32
    %c0_i32_0 = arith.constant 0 : i32
    %c0_i32_1 = arith.constant 0 : i32
    %c0_i32_2 = arith.constant 0 : i32
    return %c0_i32, %c0_i32_0, %c0_i32_1 : i32, i32, i32
  }
  func.func @transform_2(%arg0: i32) -> (i32, i32, i32) {
    %c0_i32 = arith.constant 0 : i32
    %c0_i32_0 = arith.constant 0 : i32
    %c0_i32_1 = arith.constant 0 : i32
    return %arg0, %c0_i32, %c0_i32_0 : i32, i32, i32
  }
  func.func @transform_3(%arg0: i32) -> (i32, i32, i32) {
    %c0_i32 = arith.constant 0 : i32
    %c0_i32_0 = arith.constant 0 : i32
    %c0_i32_1 = arith.constant 0 : i32
    return %arg0, %c0_i32, %c0_i32_0 : i32, i32, i32
  }
  func.func @transform_4(%arg0: i32) -> (i32, i32, i32) {
    %c0_i32 = arith.constant 0 : i32
    %c0_i32_0 = arith.constant 0 : i32
    %c0_i32_1 = arith.constant 0 : i32
    return %arg0, %c0_i32, %c0_i32_0 : i32, i32, i32
  }
  func.func @transform_5(%arg0: i32) -> (i32, i32, i32) {
    %c0_i32 = arith.constant 0 : i32
    %c0_i32_0 = arith.constant 0 : i32
    %c0_i32_1 = arith.constant 0 : i32
    return %arg0, %c0_i32, %c0_i32_0 : i32, i32, i32
  }
  func.func @transform_6(%arg0: i32) -> (i32, i32, i32) {
    %c0_i32 = arith.constant 0 : i32
    %c0_i32_0 = arith.constant 0 : i32
    %c0_i32_1 = arith.constant 0 : i32
    return %arg0, %c0_i32, %c0_i32_0 : i32, i32, i32
  }
  func.func @transform_7(%arg0: i32) -> (i32, i32, i32) {
    %c0_i32 = arith.constant 0 : i32
    %c0_i32_0 = arith.constant 0 : i32
    %c0_i32_1 = arith.constant 0 : i32
    return %arg0, %c0_i32, %c0_i32_0 : i32, i32, i32
  }
  func.func @transform_8(%arg0: i32) -> (i32, i32, i32) {
    %c0_i32 = arith.constant 0 : i32
    %c0_i32_0 = arith.constant 0 : i32
    %c0_i32_1 = arith.constant 0 : i32
    return %arg0, %c0_i32, %c0_i32_0 : i32, i32, i32
  }
  func.func @transform_9(%arg0: i32) -> (i32, i32, i32) {
    %c0_i32 = arith.constant 0 : i32
    %c0_i32_0 = arith.constant 0 : i32
    %c0_i32_1 = arith.constant 0 : i32
    return %arg0, %c0_i32, %c0_i32_0 : i32, i32, i32
  }
  func.func @transform_10(%arg0: i32) -> (i32, i32, i32) {
    %c0_i32 = arith.constant 0 : i32
    %c0_i32_0 = arith.constant 0 : i32
    %c0_i32_1 = arith.constant 0 : i32
    return %arg0, %c0_i32, %c0_i32_0 : i32, i32, i32
  }
  func.func @transform_11(%arg0: i32) -> (i32, i32, i32) {
    %c0_i32 = arith.constant 0 : i32
    %c0_i32_0 = arith.constant 0 : i32
    %c0_i32_1 = arith.constant 0 : i32
    return %arg0, %c0_i32, %c0_i32_0 : i32, i32, i32
  }
  func.func @transform_12(%arg0: i32) -> (i32, i32, i32) {
    %c0_i32 = arith.constant 0 : i32
    %c0_i32_0 = arith.constant 0 : i32
    %c0_i32_1 = arith.constant 0 : i32
    %c0_i32_2 = arith.constant 0 : i32
    return %c0_i32, %c0_i32_0, %c0_i32_1 : i32, i32, i32
  }
}

</mosaic_0001>

<llo_original>
// kernel: transformer_encoder_forward.1
$region0: #{transformer_encoder_forward.1}
  #allocation0 [shape = 'u32[]', space=smem, size = 0x4, offset = 0x4, fixed_abs, tag = 'smem constant byte address 0x4 - core index']
  #allocation1 [shape = 'u32[72,128]{1,0:T(1,128)}', space=vmem, size = 0x9000, scoped, tag = 'internal scratch']
  %s0 = inlined_call_operand.hbm [shape: f32[2,8,32], index: 0, kind: input, shape index: {}, may-alias: {0,12}]
  %s1 = inlined_call_operand.vmem [shape: f32[2,1,8], index: 1, kind: input, shape index: {}]
  %s2 = inlined_call_operand.vmem [shape: bf16[2,32,96], index: 2, kind: input, shape index: {}]
  %s3 = inlined_call_operand.vmem [shape: bf16[2,32,32], index: 3, kind: input, shape index: {}]
  %s4 = inlined_call_operand.vmem [shape: f32[2,1,32], index: 4, kind: input, shape index: {}]
  %s5 = inlined_call_operand.vmem [shape: f32[2,1,32], index: 5, kind: input, shape index: {}]
  %s6 = inlined_call_operand.vmem [shape: bf16[2,32,64], index: 6, kind: input, shape index: {}]
  %s7 = inlined_call_operand.vmem [shape: f32[2,1,64], index: 7, kind: input, shape index: {}]
  %s8 = inlined_call_operand.vmem [shape: bf16[2,64,32], index: 8, kind: input, shape index: {}]
  %s9 = inlined_call_operand.vmem [shape: f32[2,1,32], index: 9, kind: input, shape index: {}]
  %s10 = inlined_call_operand.vmem [shape: f32[2,1,32], index: 10, kind: input, shape index: {}]
  %s11 = inlined_call_operand.vmem [shape: f32[2,1,32], index: 11, kind: input, shape index: {}]
  %s12 = inlined_call_operand.hbm [shape: f32[2,8,32], index: 12, kind: output, shape index: {}, may-alias: {0,12}]
  %s13 = sld [smem:[#allocation0]]
  $region89: #{transformer_encoder_forward.1} parent=0
    _
  %s15 = ssub.s32 1, %s13
  %s16 = scalar_select 0, %s15, %s13
  $region1: #{transformer_encoder_forward.1} parent=0
    #allocation2 [shape = 'u8[8192]{0}', space=vmem, size = 0x2000, scoped, tag = 'input window, operand 0, single buffered']
    #allocation3 [shape = 's32[2]{0}', space=sflag, size = 0x8, scoped, tag = 'scoped memory for transformer_encoder_forward.1']
    #allocation4 [shape = 's32[2]{0}', space=sflag, size = 0x8, scoped, tag = 'scoped memory for transformer_encoder_forward.1']
    #allocation5 [shape = 'u8[8192]{0}', space=vmem, size = 0x2000, scoped, tag = 'output window, operand 0, single buffered']
    %17 = vsyncpa [#allocation3], 0
    %18 = vsyncpa [#allocation4], 0
    loop: start=0, step=1, limit=4
    $region2: #{transformer_encoder_forward.1} parent=1 // loop_pre_header
      _
    $region3: #{transformer_encoder_forward.1} parent=1 // loop_header
      %s20 = sphi 0, %s24
      %p21 = scmp.ge.s32.totalorder %s20, 4
      %s28 = sphi 0, %s28
      %s30 = sphi 0, %s28
      %s31 = sphi 0, %s30
      %s45 = sphi 0, %s31
      %s49 = sphi 0, %s49
      %s51 = sphi 0, %s49
      %s52 = sphi 0, %s51
      %s66 = sphi 0, %s52
      %s72 = sphi 0, %s74
      %s75 = sphi 0, %s72
      %s76 = sphi 0, %s75
      %s92 = sphi 0, %s76
      %s98 = sphi 0, %s100
      %s101 = sphi 0, %s98
      %s102 = sphi 0, %s101
      %s118 = sphi 0, %s102
      %s124 = sphi 0, %s126
      %s127 = sphi 0, %s124
      %s128 = sphi 0, %s127
      %s144 = sphi 0, %s128
      %s150 = sphi 0, %s152
      %s153 = sphi 0, %s150
      %s154 = sphi 0, %s153
      %s170 = sphi 0, %s154
      %s176 = sphi 0, %s178
      %s179 = sphi 0, %s176
      %s180 = sphi 0, %s179
      %s196 = sphi 0, %s180
      %s202 = sphi 0, %s204
      %s205 = sphi 0, %s202
      %s206 = sphi 0, %s205
      %s222 = sphi 0, %s206
      %s228 = sphi 0, %s230
      %s231 = sphi 0, %s228
      %s232 = sphi 0, %s231
      %s248 = sphi 0, %s232
      %s254 = sphi 0, %s256
      %s257 = sphi 0, %s254
      %s258 = sphi 0, %s257
      %s274 = sphi 0, %s258
      %s280 = sphi 0, %s282
      %s283 = sphi 0, %s280
      %s284 = sphi 0, %s283
      %s300 = sphi 0, %s284
      %s306 = sphi 0, %s308
      %s309 = sphi 0, %s306
      %s310 = sphi 0, %s309
      %s326 = sphi 0, %s310
      %s330 = sphi 0, %s330
      %s332 = sphi 0, %s330
      %s333 = sphi 0, %s332
      %s347 = sphi 0, %s333
    $region4: #{transformer_encoder_forward.1} parent=1 // loop_header_branch
      %23 = sbr.rel (%p21) target = $region8
    $region5: #{transformer_encoder_forward.1} parent=1 // loop_body
      %s25 = ssub.s32 %s20, 1
      %s26 = ssub.s32 %s20, 2
      %s27 = sadd.s32 %s20, 1
      %s29 = sadd.s32 %s28, 1
      %p32 = scmp.eq.s32.totalorder %s20, 1
      %p33 = scmp.ne.s32.totalorder %s28, %s30
      %p34 = scmp.eq.s32.totalorder %s20, 0
      %p35 = por %p33, %p34
      %p36 = scmp.ne.s32.totalorder %s28, %s30
      %p37 = scmp.eq.s32.totalorder %s25, 1
      %p38 = por %p36, %p37
      %p39 = scmp.ne.s32.totalorder %s30, %s31
      %p40 = scmp.eq.s32.totalorder %s25, 0
      %p41 = por %p39, %p40
      %p42 = scmp.ne.s32.totalorder %s30, %s31
      %p43 = scmp.eq.s32.totalorder %s26, 1
      %p44 = por %p42, %p43
      %p46 = scmp.ne.s32.totalorder %s31, %s45
      %p47 = scmp.eq.s32.totalorder %s26, 0
      %p48 = por %p46, %p47
      %s50 = sadd.s32 %s49, 1
      %p53 = scmp.eq.s32.totalorder %s20, 1
      %p54 = scmp.ne.s32.totalorder %s49, %s51
      %p55 = scmp.eq.s32.totalorder %s20, 0
      %p56 = por %p54, %p55
      %p57 = scmp.ne.s32.totalorder %s49, %s51
      %p58 = scmp.eq.s32.totalorder %s25, 1
      %p59 = por %p57, %p58
      %p60 = scmp.ne.s32.totalorder %s51, %s52
      %p61 = scmp.eq.s32.totalorder %s25, 0
      %p62 = por %p60, %p61
      %p63 = scmp.ne.s32.totalorder %s51, %s52
      %p64 = scmp.eq.s32.totalorder %s26, 1
      %p65 = por %p63, %p64
      %p67 = scmp.ne.s32.totalorder %s52, %s66
      %p68 = scmp.eq.s32.totalorder %s26, 0
      %p69 = por %p67, %p68
      %s70 = ssub.s32 %s20, %s27
      %p71 = scmp.eq.s32.totalorder %s70, 0
      %s73 = sadd.s32 %s72, 1
      %s74 = scalar_select %p71, %s72, %s73
      %p77 = pneg %p71
      %p78 = scmp.eq.s32.totalorder %s20, 1
      %p79 = por %p77, %p78
      %p80 = scmp.ne.s32.totalorder %s72, %s75
      %p81 = scmp.eq.s32.totalorder %s20, 0
      %p82 = por %p80, %p81
      %p83 = scmp.ne.s32.totalorder %s72, %s75
      %p84 = scmp.eq.s32.totalorder %s25, 1
      %p85 = por %p83, %p84
      %p86 = scmp.ne.s32.totalorder %s75, %s76
      %p87 = scmp.eq.s32.totalorder %s25, 0
      %p88 = por %p86, %p87
      %p89 = scmp.ne.s32.totalorder %s75, %s76
      %p90 = scmp.eq.s32.totalorder %s26, 1
      %p91 = por %p89, %p90
      %p93 = scmp.ne.s32.totalorder %s76, %s92
      %p94 = scmp.eq.s32.totalorder %s26, 0
      %p95 = por %p93, %p94
      %s96 = ssub.s32 %s20, %s27
      %p97 = scmp.eq.s32.totalorder %s96, 0
      %s99 = sadd.s32 %s98, 1
      %s100 = scalar_select %p97, %s98, %s99
      %p103 = pneg %p97
      %p104 = scmp.eq.s32.totalorder %s20, 1
      %p105 = por %p103, %p104
      %p106 = scmp.ne.s32.totalorder %s98, %s101
      %p107 = scmp.eq.s32.totalorder %s20, 0
      %p108 = por %p106, %p107
      %p109 = scmp.ne.s32.totalorder %s98, %s101
      %p110 = scmp.eq.s32.totalorder %s25, 1
      %p111 = por %p109, %p110
      %p112 = scmp.ne.s32.totalorder %s101, %s102
      %p113 = scmp.eq.s32.totalorder %s25, 0
      %p114 = por %p112, %p113
      %p115 = scmp.ne.s32.totalorder %s101, %s102
      %p116 = scmp.eq.s32.totalorder %s26, 1
      %p117 = por %p115, %p116
      %p119 = scmp.ne.s32.totalorder %s102, %s118
      %p120 = scmp.eq.s32.totalorder %s26, 0
      %p121 = por %p119, %p120
      %s122 = ssub.s32 %s20, %s27
      %p123 = scmp.eq.s32.totalorder %s122, 0
      %s125 = sadd.s32 %s124, 1
      %s126 = scalar_select %p123, %s124, %s125
      %p129 = pneg %p123
      %p130 = scmp.eq.s32.totalorder %s20, 1
      %p131 = por %p129, %p130
      %p132 = scmp.ne.s32.totalorder %s124, %s127
      %p133 = scmp.eq.s32.totalorder %s20, 0
      %p134 = por %p132, %p133
      %p135 = scmp.ne.s32.totalorder %s124, %s127
      %p136 = scmp.eq.s32.totalorder %s25, 1
      %p137 = por %p135, %p136
      %p138 = scmp.ne.s32.totalorder %s127, %s128
      %p139 = scmp.eq.s32.totalorder %s25, 0
      %p140 = por %p138, %p139
      %p141 = scmp.ne.s32.totalorder %s127, %s128
      %p142 = scmp.eq.s32.totalorder %s26, 1
      %p143 = por %p141, %p142
      %p145 = scmp.ne.s32.totalorder %s128, %s144
      %p146 = scmp.eq.s32.totalorder %s26, 0
      %p147 = por %p145, %p146
      %s148 = ssub.s32 %s20, %s27
      %p149 = scmp.eq.s32.totalorder %s148, 0
      %s151 = sadd.s32 %s150, 1
      %s152 = scalar_select %p149, %s150, %s151
      %p155 = pneg %p149
      %p156 = scmp.eq.s32.totalorder %s20, 1
      %p157 = por %p155, %p156
      %p158 = scmp.ne.s32.totalorder %s150, %s153
      %p159 = scmp.eq.s32.totalorder %s20, 0
      %p160 = por %p158, %p159
      %p161 = scmp.ne.s32.totalorder %s150, %s153
      %p162 = scmp.eq.s32.totalorder %s25, 1
      %p163 = por %p161, %p162
      %p164 = scmp.ne.s32.totalorder %s153, %s154
      %p165 = scmp.eq.s32.totalorder %s25, 0
      %p166 = por %p164, %p165
      %p167 = scmp.ne.s32.totalorder %s153, %s154
      %p168 = scmp.eq.s32.totalorder %s26, 1
      %p169 = por %p167, %p168
      %p171 = scmp.ne.s32.totalorder %s154, %s170
      %p172 = scmp.eq.s32.totalorder %s26, 0
      %p173 = por %p171, %p172
      %s174 = ssub.s32 %s20, %s27
      %p175 = scmp.eq.s32.totalorder %s174, 0
      %s177 = sadd.s32 %s176, 1
      %s178 = scalar_select %p175, %s176, %s177
      %p181 = pneg %p175
      %p182 = scmp.eq.s32.totalorder %s20, 1
      %p183 = por %p181, %p182
      %p184 = scmp.ne.s32.totalorder %s176, %s179
      %p185 = scmp.eq.s32.totalorder %s20, 0
      %p186 = por %p184, %p185
      %p187 = scmp.ne.s32.totalorder %s176, %s179
      %p188 = scmp.eq.s32.totalorder %s25, 1
      %p189 = por %p187, %p188
      %p190 = scmp.ne.s32.totalorder %s179, %s180
      %p191 = scmp.eq.s32.totalorder %s25, 0
      %p192 = por %p190, %p191
      %p193 = scmp.ne.s32.totalorder %s179, %s180
      %p194 = scmp.eq.s32.totalorder %s26, 1
      %p195 = por %p193, %p194
      %p197 = scmp.ne.s32.totalorder %s180, %s196
      %p198 = scmp.eq.s32.totalorder %s26, 0
      %p199 = por %p197, %p198
      %s200 = ssub.s32 %s20, %s27
      %p201 = scmp.eq.s32.totalorder %s200, 0
      %s203 = sadd.s32 %s202, 1
      %s204 = scalar_select %p201, %s202, %s203
      %p207 = pneg %p201
      %p208 = scmp.eq.s32.totalorder %s20, 1
      %p209 = por %p207, %p208
      %p210 = scmp.ne.s32.totalorder %s202, %s205
      %p211 = scmp.eq.s32.totalorder %s20, 0
      %p212 = por %p210, %p211
      %p213 = scmp.ne.s32.totalorder %s202, %s205
      %p214 = scmp.eq.s32.totalorder %s25, 1
      %p215 = por %p213, %p214
      %p216 = scmp.ne.s32.totalorder %s205, %s206
      %p217 = scmp.eq.s32.totalorder %s25, 0
      %p218 = por %p216, %p217
      %p219 = scmp.ne.s32.totalorder %s205, %s206
      %p220 = scmp.eq.s32.totalorder %s26, 1
      %p221 = por %p219, %p220
      %p223 = scmp.ne.s32.totalorder %s206, %s222
      %p224 = scmp.eq.s32.totalorder %s26, 0
      %p225 = por %p223, %p224
      %s226 = ssub.s32 %s20, %s27
      %p227 = scmp.eq.s32.totalorder %s226, 0
      %s229 = sadd.s32 %s228, 1
      %s230 = scalar_select %p227, %s228, %s229
      %p233 = pneg %p227
      %p234 = scmp.eq.s32.totalorder %s20, 1
      %p235 = por %p233, %p234
      %p236 = scmp.ne.s32.totalorder %s228, %s231
      %p237 = scmp.eq.s32.totalorder %s20, 0
      %p238 = por %p236, %p237
      %p239 = scmp.ne.s32.totalorder %s228, %s231
      %p240 = scmp.eq.s32.totalorder %s25, 1
      %p241 = por %p239, %p240
      %p242 = scmp.ne.s32.totalorder %s231, %s232
      %p243 = scmp.eq.s32.totalorder %s25, 0
      %p244 = por %p242, %p243
      %p245 = scmp.ne.s32.totalorder %s231, %s232
      %p246 = scmp.eq.s32.totalorder %s26, 1
      %p247 = por %p245, %p246
      %p249 = scmp.ne.s32.totalorder %s232, %s248
      %p250 = scmp.eq.s32.totalorder %s26, 0
      %p251 = por %p249, %p250
      %s252 = ssub.s32 %s20, %s27
      %p253 = scmp.eq.s32.totalorder %s252, 0
      %s255 = sadd.s32 %s254, 1
      %s256 = scalar_select %p253, %s254, %s255
      %p259 = pneg %p253
      %p260 = scmp.eq.s32.totalorder %s20, 1
      %p261 = por %p259, %p260
      %p262 = scmp.ne.s32.totalorder %s254, %s257
      %p263 = scmp.eq.s32.totalorder %s20, 0
      %p264 = por %p262, %p263
      %p265 = scmp.ne.s32.totalorder %s254, %s257
      %p266 = scmp.eq.s32.totalorder %s25, 1
      %p267 = por %p265, %p266
      %p268 = scmp.ne.s32.totalorder %s257, %s258
      %p269 = scmp.eq.s32.totalorder %s25, 0
      %p270 = por %p268, %p269
      %p271 = scmp.ne.s32.totalorder %s257, %s258
      %p272 = scmp.eq.s32.totalorder %s26, 1
      %p273 = por %p271, %p272
      %p275 = scmp.ne.s32.totalorder %s258, %s274
      %p276 = scmp.eq.s32.totalorder %s26, 0
      %p277 = por %p275, %p276
      %s278 = ssub.s32 %s20, %s27
      %p279 = scmp.eq.s32.totalorder %s278, 0
      %s281 = sadd.s32 %s280, 1
      %s282 = scalar_select %p279, %s280, %s281
      %p285 = pneg %p279
      %p286 = scmp.eq.s32.totalorder %s20, 1
      %p287 = por %p285, %p286
      %p288 = scmp.ne.s32.totalorder %s280, %s283
      %p289 = scmp.eq.s32.totalorder %s20, 0
      %p290 = por %p288, %p289
      %p291 = scmp.ne.s32.totalorder %s280, %s283
      %p292 = scmp.eq.s32.totalorder %s25, 1
      %p293 = por %p291, %p292
      %p294 = scmp.ne.s32.totalorder %s283, %s284
      %p295 = scmp.eq.s32.totalorder %s25, 0
      %p296 = por %p294, %p295
      %p297 = scmp.ne.s32.totalorder %s283, %s284
      %p298 = scmp.eq.s32.totalorder %s26, 1
      %p299 = por %p297, %p298
      %p301 = scmp.ne.s32.totalorder %s284, %s300
      %p302 = scmp.eq.s32.totalorder %s26, 0
      %p303 = por %p301, %p302
      %s304 = ssub.s32 %s20, %s27
      %p305 = scmp.eq.s32.totalorder %s304, 0
      %s307 = sadd.s32 %s306, 1
      %s308 = scalar_select %p305, %s306, %s307
      %p311 = pneg %p305
      %p312 = scmp.eq.s32.totalorder %s20, 1
      %p313 = por %p311, %p312
      %p314 = scmp.ne.s32.totalorder %s306, %s309
      %p315 = scmp.eq.s32.totalorder %s20, 0
      %p316 = por %p314, %p315
      %p317 = scmp.ne.s32.totalorder %s306, %s309
      %p318 = scmp.eq.s32.totalorder %s25, 1
      %p319 = por %p317, %p318
      %p320 = scmp.ne.s32.totalorder %s309, %s310
      %p321 = scmp.eq.s32.totalorder %s25, 0
      %p322 = por %p320, %p321
      %p323 = scmp.ne.s32.totalorder %s309, %s310
      %p324 = scmp.eq.s32.totalorder %s26, 1
      %p325 = por %p323, %p324
      %p327 = scmp.ne.s32.totalorder %s310, %s326
      %p328 = scmp.eq.s32.totalorder %s26, 0
      %p329 = por %p327, %p328
      %s331 = sadd.s32 %s330, 1
      %p334 = scmp.eq.s32.totalorder %s20, 1
      %p335 = scmp.ne.s32.totalorder %s330, %s332
      %p336 = scmp.eq.s32.totalorder %s20, 0
      %p337 = por %p335, %p336
      %p338 = scmp.ne.s32.totalorder %s330, %s332
      %p339 = scmp.eq.s32.totalorder %s25, 1
      %p340 = por %p338, %p339
      %p341 = scmp.ne.s32.totalorder %s332, %s333
      %p342 = scmp.eq.s32.totalorder %s25, 0
      %p343 = por %p341, %p342
      %p344 = scmp.ne.s32.totalorder %s332, %s333
      %p345 = scmp.eq.s32.totalorder %s26, 1
      %p346 = por %p344, %p345
      %p348 = scmp.ne.s32.totalorder %s333, %s347
      %p349 = scmp.eq.s32.totalorder %s26, 0
      %p350 = por %p348, %p349
      %p351 = scmp.le.s32.totalorder 1, %s20
      %p352 = scmp.lt.s32.totalorder %s20, 3
      %p353 = pnand %p351, %p352
      %p354 = pneg %p353
      // Predicated region
      $region9: #{transformer_encoder_forward.1} parent=5 // pred_check
        _
      $region10: #{transformer_encoder_forward.1} parent=5 // pred_check_branch
        %356 = sbr.rel (%p353) target = $region12
      $region11: #{transformer_encoder_forward.1} parent=5 // pred_region
        %s357 = ssub.s32 %s20, 1
        // Predicated region
        $region13: #{transformer_encoder_forward.1} parent=11 // pred_check
          %p358 = pneg %p41
        $region14: #{transformer_encoder_forward.1} parent=11 // pred_check_branch
          %360 = sbr.rel (%p358) target = $region16
        $region15: #{transformer_encoder_forward.1} parent=11 // pred_region
          %362 = vsyncadd [#allocation3], 0
          %s363 = sshll.u32 %s0, 4
          %s364 = int_to_ptr.hbm [resolvable:$true] %s363
          %s365 = sshll.u32 [#allocation2], 4
          %s366 = int_to_ptr.vmem [resolvable:$true] %s365
          %371 = dma.hbm_to_vmem [thread:$0]  %s364, 256, %s366, [#allocation3], 128, 128, 8
        $region16: #{transformer_encoder_forward.1} parent=11 // pred_fallthru
          _
        // Predicated region
        $region17: #{transformer_encoder_forward.1} parent=11 // pred_check
          %p372 = pneg %p62
        $region18: #{transformer_encoder_forward.1} parent=11 // pred_check_branch
          %374 = sbr.rel (%p372) target = $region20
        $region19: #{transformer_encoder_forward.1} parent=11 // pred_region
          _
        $region20: #{transformer_encoder_forward.1} parent=11 // pred_fallthru
          _
      $region12: #{transformer_encoder_forward.1} parent=5 // pred_fallthru
        _
      %p375 = scmp.lt.s32.totalorder %s20, 2
      // Predicated region
      $region21: #{transformer_encoder_forward.1} parent=5 // pred_check
        %p376 = pneg %p375
      $region22: #{transformer_encoder_forward.1} parent=5 // pred_check_branch
        %378 = sbr.rel (%p376) target = $region24
      $region23: #{transformer_encoder_forward.1} parent=5 // pred_region
        // Predicated region
        $region25: #{transformer_encoder_forward.1} parent=23 // pred_check
          %p379 = pneg %p82
        $region26: #{transformer_encoder_forward.1} parent=23 // pred_check_branch
          %381 = sbr.rel (%p379) target = $region28
        $region27: #{transformer_encoder_forward.1} parent=23 // pred_region
          %p382 = scmp.lt.s32.totalorder %s20, 1
          %s383 = scalar_select %p382, %s20, 1
          %s384 = smul.addr %s383, 4
          %s385 = smul.addr %s384, 4
          %s386 = scalar_lea.vmem %s2, %s385
        $region28: #{transformer_encoder_forward.1} parent=23 // pred_fallthru
          _
        // Predicated region
        $region29: #{transformer_encoder_forward.1} parent=23 // pred_check
          %p387 = pneg %p108
        $region30: #{transformer_encoder_forward.1} parent=23 // pred_check_branch
          %389 = sbr.rel (%p387) target = $region32
        $region31: #{transformer_encoder_forward.1} parent=23 // pred_region
          %p390 = scmp.lt.s32.totalorder %s20, 1
          %s391 = scalar_select %p390, %s20, 1
          %s392 = smul.addr %s391, 4
          %s393 = smul.addr %s392, 4
          %s394 = scalar_lea.vmem %s3, %s393
        $region32: #{transformer_encoder_forward.1} parent=23 // pred_fallthru
          _
        // Predicated region
        $region33: #{transformer_encoder_forward.1} parent=23 // pred_check
          %p395 = pneg %p134
        $region34: #{transformer_encoder_forward.1} parent=23 // pred_check_branch
          %397 = sbr.rel (%p395) target = $region36
        $region35: #{transformer_encoder_forward.1} parent=23 // pred_region
          %p398 = scmp.lt.s32.totalorder %s20, 1
          %s399 = scalar_select %p398, %s20, 1
          %s400 = scalar_lea.vmem %s4, %s399
        $region36: #{transformer_encoder_forward.1} parent=23 // pred_fallthru
          _
        // Predicated region
        $region37: #{transformer_encoder_forward.1} parent=23 // pred_check
          %p401 = pneg %p160
        $region38: #{transformer_encoder_forward.1} parent=23 // pred_check_branch
          %403 = sbr.rel (%p401) target = $region40
        $region39: #{transformer_encoder_forward.1} parent=23 // pred_region
          %p404 = scmp.lt.s32.totalorder %s20, 1
          %s405 = scalar_select %p404, %s20, 1
          %s406 = scalar_lea.vmem %s5, %s405
        $region40: #{transformer_encoder_forward.1} parent=23 // pred_fallthru
          _
        // Predicated region
        $region41: #{transformer_encoder_forward.1} parent=23 // pred_check
          %p407 = pneg %p186
        $region42: #{transformer_encoder_forward.1} parent=23 // pred_check_branch
          %409 = sbr.rel (%p407) target = $region44
        $region43: #{transformer_encoder_forward.1} parent=23 // pred_region
          %p410 = scmp.lt.s32.totalorder %s20, 1
          %s411 = scalar_select %p410, %s20, 1
          %s412 = smul.addr %s411, 4
          %s413 = smul.addr %s412, 4
          %s414 = scalar_lea.vmem %s6, %s413
        $region44: #{transformer_encoder_forward.1} parent=23 // pred_fallthru
          _
        // Predicated region
        $region45: #{transformer_encoder_forward.1} parent=23 // pred_check
          %p415 = pneg %p212
        $region46: #{transformer_encoder_forward.1} parent=23 // pred_check_branch
          %417 = sbr.rel (%p415) target = $region48
        $region47: #{transformer_encoder_forward.1} parent=23 // pred_region
          %p418 = scmp.lt.s32.totalorder %s20, 1
          %s419 = scalar_select %p418, %s20, 1
          %s420 = scalar_lea.vmem %s7, %s419
        $region48: #{transformer_encoder_forward.1} parent=23 // pred_fallthru
          _
        // Predicated region
        $region49: #{transformer_encoder_forward.1} parent=23 // pred_check
          %p421 = pneg %p238
        $region50: #{transformer_encoder_forward.1} parent=23 // pred_check_branch
          %423 = sbr.rel (%p421) target = $region52
        $region51: #{transformer_encoder_forward.1} parent=23 // pred_region
          %p424 = scmp.lt.s32.totalorder %s20, 1
          %s425 = scalar_select %p424, %s20, 1
          %s426 = smul.addr %s425, 8
          %s427 = smul.addr %s426, 4
          %s428 = scalar_lea.vmem %s8, %s427
        $region52: #{transformer_encoder_forward.1} parent=23 // pred_fallthru
          _
        // Predicated region
        $region53: #{transformer_encoder_forward.1} parent=23 // pred_check
          %p429 = pneg %p264
        $region54: #{transformer_encoder_forward.1} parent=23 // pred_check_branch
          %431 = sbr.rel (%p429) target = $region56
        $region55: #{transformer_encoder_forward.1} parent=23 // pred_region
          %p432 = scmp.lt.s32.totalorder %s20, 1
          %s433 = scalar_select %p432, %s20, 1
          %s434 = scalar_lea.vmem %s9, %s433
        $region56: #{transformer_encoder_forward.1} parent=23 // pred_fallthru
          _
        // Predicated region
        $region57: #{transformer_encoder_forward.1} parent=23 // pred_check
          %p435 = pneg %p290
        $region58: #{transformer_encoder_forward.1} parent=23 // pred_check_branch
          %437 = sbr.rel (%p435) target = $region60
        $region59: #{transformer_encoder_forward.1} parent=23 // pred_region
          %p438 = scmp.lt.s32.totalorder %s20, 1
          %s439 = scalar_select %p438, %s20, 1
          %s440 = scalar_lea.vmem %s10, %s439
        $region60: #{transformer_encoder_forward.1} parent=23 // pred_fallthru
          _
        // Predicated region
        $region61: #{transformer_encoder_forward.1} parent=23 // pred_check
          %p441 = pneg %p316
        $region62: #{transformer_encoder_forward.1} parent=23 // pred_check_branch
          %443 = sbr.rel (%p441) target = $region64
        $region63: #{transformer_encoder_forward.1} parent=23 // pred_region
          %p444 = scmp.lt.s32.totalorder %s20, 1
          %s445 = scalar_select %p444, %s20, 1
          %s446 = scalar_lea.vmem %s11, %s445
        $region64: #{transformer_encoder_forward.1} parent=23 // pred_fallthru
          _
      $region24: #{transformer_encoder_forward.1} parent=5 // pred_fallthru
        _
      %p447 = scmp.le.s32.totalorder 1, %s20
      %p448 = scmp.lt.s32.totalorder %s20, 3
      %p449 = pnand %p447, %p448
      %p450 = pneg %p449
      // Predicated region
      $region65: #{transformer_encoder_forward.1} parent=5 // pred_check
        _
      $region66: #{transformer_encoder_forward.1} parent=5 // pred_check_branch
        %452 = sbr.rel (%p449) target = $region68
      $region67: #{transformer_encoder_forward.1} parent=5 // pred_region
        %s453 = ssub.s32 %s20, 1
        // Predicated region
        $region69: #{transformer_encoder_forward.1} parent=67 // pred_check
          %p454 = pneg %p41
        $region70: #{transformer_encoder_forward.1} parent=67 // pred_check_branch
          %456 = sbr.rel (%p454) target = $region72
        $region71: #{transformer_encoder_forward.1} parent=67 // pred_region
          %458 = dma.done [#allocation3], 256
        $region72: #{transformer_encoder_forward.1} parent=67 // pred_fallthru
          _
        %p459 = pneg %p41
        %p460 = pneg %p38
        %p461 = pneg %p62
        %p462 = pneg %p59
        %p463 = scmp.lt.s32.totalorder %s25, 1
        %s464 = scalar_select %p463, %s25, 1
        %s465 = smul.addr %s464, 4
        %s466 = smul.addr %s465, 4
        %s467 = scalar_lea.vmem %s2, %s466
        %p468 = pneg %p88
        %p469 = pneg %p85
        %p470 = scmp.lt.s32.totalorder %s25, 1
        %s471 = scalar_select %p470, %s25, 1
        %s472 = smul.addr %s471, 4
        %s473 = smul.addr %s472, 4
        %s474 = scalar_lea.vmem %s3, %s473
        %p475 = pneg %p114
        %p476 = pneg %p111
        %p477 = scmp.lt.s32.totalorder %s25, 1
        %s478 = scalar_select %p477, %s25, 1
        %s479 = scalar_lea.vmem %s4, %s478
        %p480 = pneg %p140
        %p481 = pneg %p137
        %p482 = scmp.lt.s32.totalorder %s25, 1
        %s483 = scalar_select %p482, %s25, 1
        %s484 = scalar_lea.vmem %s5, %s483
        %p485 = pneg %p166
        %p486 = pneg %p163
        %p487 = scmp.lt.s32.totalorder %s25, 1
        %s488 = scalar_select %p487, %s25, 1
        %s489 = smul.addr %s488, 4
        %s490 = smul.addr %s489, 4
        %s491 = scalar_lea.vmem %s6, %s490
        %p492 = pneg %p192
        %p493 = pneg %p189
        %p494 = scmp.lt.s32.totalorder %s25, 1
        %s495 = scalar_select %p494, %s25, 1
        %s496 = scalar_lea.vmem %s7, %s495
        %p497 = pneg %p218
        %p498 = pneg %p215
        %p499 = scmp.lt.s32.totalorder %s25, 1
        %s500 = scalar_select %p499, %s25, 1
        %s501 = smul.addr %s500, 8
        %s502 = smul.addr %s501, 4
        %s503 = scalar_lea.vmem %s8, %s502
        %p504 = pneg %p244
        %p505 = pneg %p241
        %p506 = scmp.lt.s32.totalorder %s25, 1
        %s507 = scalar_select %p506, %s25, 1
        %s508 = scalar_lea.vmem %s9, %s507
        %p509 = pneg %p270
        %p510 = pneg %p267
        %p511 = scmp.lt.s32.totalorder %s25, 1
        %s512 = scalar_select %p511, %s25, 1
        %s513 = scalar_lea.vmem %s10, %s512
        %p514 = pneg %p296
        %p515 = pneg %p293
        %p516 = scmp.lt.s32.totalorder %s25, 1
        %s517 = scalar_select %p516, %s25, 1
        %s518 = scalar_lea.vmem %s11, %s517
        %p519 = pneg %p322
        %p520 = pneg %p319
        %p521 = pneg %p343
        %p522 = pneg %p340
        %p523 = scmp.lt.s32.totalorder %s25, 1
        %s524 = scalar_select %p523, %s25, 1
        %s525 = smul.addr %s524, 4
        %s526 = smul.addr %s525, 4
        %s527 = scalar_lea.vmem %s2, %s526
        %p528 = scmp.lt.s32.totalorder %s25, 1
        %s529 = scalar_select %p528, %s25, 1
        %s530 = smul.addr %s529, 4
        %s531 = smul.addr %s530, 4
        %s532 = scalar_lea.vmem %s3, %s531
        %p533 = scmp.lt.s32.totalorder %s25, 1
        %s534 = scalar_select %p533, %s25, 1
        %s535 = scalar_lea.vmem %s4, %s534
        %p536 = scmp.lt.s32.totalorder %s25, 1
        %s537 = scalar_select %p536, %s25, 1
        %s538 = scalar_lea.vmem %s5, %s537
        %p539 = scmp.lt.s32.totalorder %s25, 1
        %s540 = scalar_select %p539, %s25, 1
        %s541 = smul.addr %s540, 4
        %s542 = smul.addr %s541, 4
        %s543 = scalar_lea.vmem %s6, %s542
        %p544 = scmp.lt.s32.totalorder %s25, 1
        %s545 = scalar_select %p544, %s25, 1
        %s546 = scalar_lea.vmem %s7, %s545
        %p547 = scmp.lt.s32.totalorder %s25, 1
        %s548 = scalar_select %p547, %s25, 1
        %s549 = smul.addr %s548, 8
        %s550 = smul.addr %s549, 4
        %s551 = scalar_lea.vmem %s8, %s550
        %p552 = scmp.lt.s32.totalorder %s25, 1
        %s553 = scalar_select %p552, %s25, 1
        %s554 = scalar_lea.vmem %s9, %s553
        %p555 = scmp.lt.s32.totalorder %s25, 1
        %s556 = scalar_select %p555, %s25, 1
        %s557 = scalar_lea.vmem %s10, %s556
        %p558 = scmp.lt.s32.totalorder %s25, 1
        %s559 = scalar_select %p558, %s25, 1
        %s560 = scalar_lea.vmem %s11, %s559
        %p562 = scmp.eq.s32.totalorder %s25, 0
        // Predicated region
        $region73: #{transformer_encoder_forward.1} parent=67 // pred_check
          %p563 = pneg %p562
        $region74: #{transformer_encoder_forward.1} parent=67 // pred_check_branch
          %565 = sbr.rel (%p563) target = $region76
        $region75: #{transformer_encoder_forward.1} parent=67 // pred_region
          %v566 = vld [vmem:[#allocation2] sm:$0xff]
          %v567 = vld [vmem:[#allocation2 + $0x8] sm:$0xff]
          %vm568 = vcmask 261120
          %569 = vst.msk [vmem:[#allocation5] sm:$0xff] %vm568, %v566
          %570 = vst.msk [vmem:[#allocation5 + $0x8] sm:$0xff] %vm568, %v567
        $region76: #{transformer_encoder_forward.1} parent=67 // pred_fallthru
          _
        %v571 = vld [vmem:[#allocation5] sm:$0xff]
        %v572 = vld [vmem:[#allocation5 + $0x8] sm:$0xff]
        %v573 = vld [vmem:[%s1] sm:$0x1]
        %v574 = vld [vmem:[%s1 + $0x1] sm:$0x1]
        %v575 = vpack.c.bf16 %v572, %v571
        %v576 = vld [vmem:[%s527] sm:$0xf]
        %v577 = vld [vmem:[%s527 + $0x4] sm:$0xf]
        %v578 = vld [vmem:[%s527 + $0x8] sm:$0xf]
        %v579 = vld [vmem:[%s527 + $0xc] sm:$0xf]
        %v584 = vunpack.c.l.b16 %v576
        %v585 = vunpack.c.l.b16 %v577
        %v586 = vunpack.c.l.b16 %v578
        %v587 = vunpack.c.l.b16 %v579
        %v588 = vpack.c.b16 %v585, %v584
        %v589 = vpack.c.b16 %v587, %v586
        %vm592 = vcmask 261120
        %v594 = vsel %vm592, %v575, 0
        %596 = vmatpush.bf16.msra.mxu0 0
        %597 = vmatpush.bf16.msra.mxu0 0
        %598 = vmatpush.bf16.msra.mxu0 0
        %599 = vmatpush.bf16.msra.mxu0 0
        %600 = vmatpush.bf16.msra.mxu0 0
        %601 = vmatpush.bf16.msra.mxu0 0
        %602 = vmatpush.bf16.msra.mxu0 %v589
        %603 = vmatpush.bf16.msra.mxu0 %v588
        %604 = vmatmul.bf16.gmra.mxu0 %v594
        %v605 = vpop.f32.mrf.mxu0
        %v606 = vadd.f32 0.0, %v605
        %v607 = vpop.f32.mrf.mxu0
        %v608 = vadd.f32 0.0, %v607
        %609 = vdwg.mxu0
        %v610 = vpack.c.bf16 %v606, %v606
        %v611 = vpack.c.bf16 %v608, %v608
        %v614 = vperm.slane %v573, 0
        %v615 = vperm.slane %v574, 0
        %v619 = vunpack.c.l.b16 %v610
        %v620 = vpack.c.b16 %v619, %v619
        %621 = vrot.lane.b32.xlu0 %v620, 96
        %v622 = vpop.permute.xlu0 %621
        %vm623 = vcmask 64512
        %v625 = vsel %vm623, %v610, 0
        %v628 = vsel %vm623, %v622, 0
        %630 = vmatpush.bf16.xpose.msra.mxu0 0
        %631 = vmatpush.bf16.xpose.msra.mxu0 0
        %632 = vmatpush.bf16.xpose.msra.mxu0 0
        %633 = vmatpush.bf16.xpose.msra.mxu0 0
        %634 = vmatpush.bf16.xpose.msra.mxu0 0
        %635 = vmatpush.bf16.xpose.msra.mxu0 0
        %636 = vmatpush.bf16.xpose.msra.mxu0 0
        %637 = vmatpush.bf16.xpose.msra.mxu0 %v628
        %638 = vmatmul.bf16.gmra.mxu0 %v625
        %v639 = vpop.f32.mrf.mxu0
        %v640 = vadd.f32 %v614, %v639
        %v641 = vpop.f32.mrf.mxu0
        %642 = vdwg.mxu0
        %v644 = vunpack.c.l.b16 %v611
        %v645 = vpack.c.b16 %v644, %v644
        %646 = vrot.lane.b32.xlu0 %v645, 96
        %v647 = vpop.permute.xlu0 %646
        %v649 = vsel %vm623, %v611, 0
        %v652 = vsel %vm623, %v647, 0
        %654 = vmatpush.bf16.xpose.msra.mxu0 0
        %655 = vmatpush.bf16.xpose.msra.mxu0 0
        %656 = vmatpush.bf16.xpose.msra.mxu0 0
        %657 = vmatpush.bf16.xpose.msra.mxu0 0
        %658 = vmatpush.bf16.xpose.msra.mxu0 0
        %659 = vmatpush.bf16.xpose.msra.mxu0 0
        %660 = vmatpush.bf16.xpose.msra.mxu0 0
        %661 = vmatpush.bf16.xpose.msra.mxu0 %v652
        %662 = vmatmul.bf16.gmra.mxu0 %v649
        %v663 = vpop.f32.mrf.mxu0
        %v664 = vadd.f32 %v615, %v663
        %v665 = vpop.f32.mrf.mxu0
        %666 = vdwg.mxu0
        %v667 = vsel %vm623, %v640, -inf
        %668 = vmax.xlane.f32.xlu0 %v667
        %v669 = vpop.xlane.xlu0 %668
        %v670 = vsel %vm623, %v664, -inf
        %671 = vmax.xlane.f32.xlu0 %v670
        %v672 = vpop.xlane.xlu0 %671
        %v673 = vsub.f32 %v640, %v669
        %v674 = vsub.f32 %v664, %v672
        %v675 = vmul.f32 %v673, 1.442695
        %v676 = vpow.pop %v675
        %v677 = vmul.f32 %v674, 1.442695
        %v678 = vpow.pop %v677
        %v679 = vsel %vm623, %v676, 0.0
        %680 = vadd.xlane.f32.xlu0 %v679
        %v681 = vpop.xlane.xlu0 %680
        %v682 = vsel %vm623, %v678, 0.0
        %683 = vadd.xlane.f32.xlu0 %v682
        %v684 = vpop.xlane.xlu0 %683
        %v685 = vrcp.pop %v681
        %v686 = vrcp.pop %v684
        %v687 = vmul.f32 %v676, %v685
        %v688 = vmul.f32 %v678, %v686
        %v689 = vpack.c.bf16 %v687, %v687
        %v690 = vpack.c.bf16 %v688, %v688
        %691 = vrot.lane.b32.xlu0 %v620, 64
        %v692 = vpop.permute.xlu0 %691
        %v694 = vsel %vm623, %v689, 0
        %vm696 = vcmask 1043456
        %v698 = vsel %vm696, %v692, 0
        %700 = vmatpush.bf16.msra.mxu0 0
        %701 = vmatpush.bf16.msra.mxu0 0
        %702 = vmatpush.bf16.msra.mxu0 0
        %703 = vmatpush.bf16.msra.mxu0 0
        %704 = vmatpush.bf16.msra.mxu0 0
        %705 = vmatpush.bf16.msra.mxu0 0
        %706 = vmatpush.bf16.msra.mxu0 0
        %707 = vmatpush.bf16.msra.mxu0 %v698
        %708 = vmatmul.bf16.gmra.mxu0 %v694
        %v709 = vpop.f32.mrf.mxu0
        %v710 = vadd.f32 0.0, %v709
        %v711 = vpop.f32.mrf.mxu0
        %712 = vdwg.mxu0
        %713 = vrot.lane.b32.xlu0 %v645, 64
        %v714 = vpop.permute.xlu0 %713
        %v716 = vsel %vm623, %v690, 0
        %v719 = vsel %vm696, %v714, 0
        %721 = vmatpush.bf16.msra.mxu0 0
        %722 = vmatpush.bf16.msra.mxu0 0
        %723 = vmatpush.bf16.msra.mxu0 0
        %724 = vmatpush.bf16.msra.mxu0 0
        %725 = vmatpush.bf16.msra.mxu0 0
        %726 = vmatpush.bf16.msra.mxu0 0
        %727 = vmatpush.bf16.msra.mxu0 0
        %728 = vmatpush.bf16.msra.mxu0 %v719
        %729 = vmatmul.bf16.gmra.mxu0 %v716
        %v730 = vpop.f32.mrf.mxu0
        %v731 = vadd.f32 0.0, %v730
        %v732 = vpop.f32.mrf.mxu0
        %733 = vdwg.mxu0
        %734 = vrot.lane.b32.xlu0 %v620, 120
        %v735 = vpop.permute.xlu0 %734
        %736 = vrot.lane.b32.xlu0 %v620, 88
        %v737 = vpop.permute.xlu0 %736
        %v739 = vsel %vm623, %v735, 0
        %v742 = vsel %vm623, %v737, 0
        %744 = vmatpush.bf16.xpose.msra.mxu0 0
        %745 = vmatpush.bf16.xpose.msra.mxu0 0
        %746 = vmatpush.bf16.xpose.msra.mxu0 0
        %747 = vmatpush.bf16.xpose.msra.mxu0 0
        %748 = vmatpush.bf16.xpose.msra.mxu0 0
        %749 = vmatpush.bf16.xpose.msra.mxu0 0
        %750 = vmatpush.bf16.xpose.msra.mxu0 0
        %751 = vmatpush.bf16.xpose.msra.mxu0 %v742
        %752 = vmatmul.bf16.gmra.mxu0 %v739
        %v753 = vpop.f32.mrf.mxu0
        %v754 = vadd.f32 %v614, %v753
        %v755 = vpop.f32.mrf.mxu0
        %756 = vdwg.mxu0
        %757 = vrot.lane.b32.xlu0 %v645, 120
        %v758 = vpop.permute.xlu0 %757
        %759 = vrot.lane.b32.xlu0 %v645, 88
        %v760 = vpop.permute.xlu0 %759
        %v762 = vsel %vm623, %v758, 0
        %v765 = vsel %vm623, %v760, 0
        %767 = vmatpush.bf16.xpose.msra.mxu0 0
        %768 = vmatpush.bf16.xpose.msra.mxu0 0
        %769 = vmatpush.bf16.xpose.msra.mxu0 0
        %770 = vmatpush.bf16.xpose.msra.mxu0 0
        %771 = vmatpush.bf16.xpose.msra.mxu0 0
        %772 = vmatpush.bf16.xpose.msra.mxu0 0
        %773 = vmatpush.bf16.xpose.msra.mxu0 0
        %774 = vmatpush.bf16.xpose.msra.mxu0 %v765
        %775 = vmatmul.bf16.gmra.mxu0 %v762
        %v776 = vpop.f32.mrf.mxu0
        %v777 = vadd.f32 %v615, %v776
        %v778 = vpop.f32.mrf.mxu0
        %779 = vdwg.mxu0
        %v780 = vsel %vm623, %v754, -inf
        %781 = vmax.xlane.f32.xlu0 %v780
        %v782 = vpop.xlane.xlu0 %781
        %v783 = vsel %vm623, %v777, -inf
        %784 = vmax.xlane.f32.xlu0 %v783
        %v785 = vpop.xlane.xlu0 %784
        %v786 = vsub.f32 %v754, %v782
        %v787 = vsub.f32 %v777, %v785
        %v788 = vmul.f32 %v786, 1.442695
        %v789 = vpow.pop %v788
        %v790 = vmul.f32 %v787, 1.442695
        %v791 = vpow.pop %v790
        %v792 = vsel %vm623, %v789, 0.0
        %793 = vadd.xlane.f32.xlu0 %v792
        %v794 = vpop.xlane.xlu0 %793
        %v795 = vsel %vm623, %v791, 0.0
        %796 = vadd.xlane.f32.xlu0 %v795
        %v797 = vpop.xlane.xlu0 %796
        %v798 = vrcp.pop %v794
        %v799 = vrcp.pop %v797
        %v800 = vmul.f32 %v789, %v798
        %v801 = vmul.f32 %v791, %v799
        %v802 = vpack.c.bf16 %v800, %v800
        %v803 = vpack.c.bf16 %v801, %v801
        %804 = vrot.lane.b32.xlu0 %v620, 56
        %v805 = vpop.permute.xlu0 %804
        %v807 = vsel %vm623, %v802, 0
        %v810 = vsel %vm696, %v805, 0
        %812 = vmatpush.bf16.msra.mxu0 0
        %813 = vmatpush.bf16.msra.mxu0 0
        %814 = vmatpush.bf16.msra.mxu0 0
        %815 = vmatpush.bf16.msra.mxu0 0
        %816 = vmatpush.bf16.msra.mxu0 0
        %817 = vmatpush.bf16.msra.mxu0 0
        %818 = vmatpush.bf16.msra.mxu0 0
        %819 = vmatpush.bf16.msra.mxu0 %v810
        %820 = vmatmul.bf16.gmra.mxu0 %v807
        %v821 = vpop.f32.mrf.mxu0
        %v822 = vadd.f32 0.0, %v821
        %v823 = vpop.f32.mrf.mxu0
        %824 = vdwg.mxu0
        %825 = vrot.lane.b32.xlu0 %v645, 56
        %v826 = vpop.permute.xlu0 %825
        %v828 = vsel %vm623, %v803, 0
        %v831 = vsel %vm696, %v826, 0
        %833 = vmatpush.bf16.msra.mxu0 0
        %834 = vmatpush.bf16.msra.mxu0 0
        %835 = vmatpush.bf16.msra.mxu0 0
        %836 = vmatpush.bf16.msra.mxu0 0
        %837 = vmatpush.bf16.msra.mxu0 0
        %838 = vmatpush.bf16.msra.mxu0 0
        %839 = vmatpush.bf16.msra.mxu0 0
        %840 = vmatpush.bf16.msra.mxu0 %v831
        %841 = vmatmul.bf16.gmra.mxu0 %v828
        %v842 = vpop.f32.mrf.mxu0
        %v843 = vadd.f32 0.0, %v842
        %v844 = vpop.f32.mrf.mxu0
        %845 = vdwg.mxu0
        %846 = vrot.lane.b32.xlu0 %v620, 112
        %v847 = vpop.permute.xlu0 %846
        %848 = vrot.lane.b32.xlu0 %v620, 80
        %v849 = vpop.permute.xlu0 %848
        %v851 = vsel %vm623, %v847, 0
        %v854 = vsel %vm623, %v849, 0
        %856 = vmatpush.bf16.xpose.msra.mxu0 0
        %857 = vmatpush.bf16.xpose.msra.mxu0 0
        %858 = vmatpush.bf16.xpose.msra.mxu0 0
        %859 = vmatpush.bf16.xpose.msra.mxu0 0
        %860 = vmatpush.bf16.xpose.msra.mxu0 0
        %861 = vmatpush.bf16.xpose.msra.mxu0 0
        %862 = vmatpush.bf16.xpose.msra.mxu0 0
        %863 = vmatpush.bf16.xpose.msra.mxu0 %v854
        %864 = vmatmul.bf16.gmra.mxu0 %v851
        %v865 = vpop.f32.mrf.mxu0
        %v866 = vadd.f32 %v614, %v865
        %v867 = vpop.f32.mrf.mxu0
        %868 = vdwg.mxu0
        %869 = vrot.lane.b32.xlu0 %v645, 112
        %v870 = vpop.permute.xlu0 %869
        %871 = vrot.lane.b32.xlu0 %v645, 80
        %v872 = vpop.permute.xlu0 %871
        %v874 = vsel %vm623, %v870, 0
        %v877 = vsel %vm623, %v872, 0
        %879 = vmatpush.bf16.xpose.msra.mxu0 0
        %880 = vmatpush.bf16.xpose.msra.mxu0 0
        %881 = vmatpush.bf16.xpose.msra.mxu0 0
        %882 = vmatpush.bf16.xpose.msra.mxu0 0
        %883 = vmatpush.bf16.xpose.msra.mxu0 0
        %884 = vmatpush.bf16.xpose.msra.mxu0 0
        %885 = vmatpush.bf16.xpose.msra.mxu0 0
        %886 = vmatpush.bf16.xpose.msra.mxu0 %v877
        %887 = vmatmul.bf16.gmra.mxu0 %v874
        %v888 = vpop.f32.mrf.mxu0
        %v889 = vadd.f32 %v615, %v888
        %v890 = vpop.f32.mrf.mxu0
        %891 = vdwg.mxu0
        %v892 = vsel %vm623, %v866, -inf
        %893 = vmax.xlane.f32.xlu0 %v892
        %v894 = vpop.xlane.xlu0 %893
        %v895 = vsel %vm623, %v889, -inf
        %896 = vmax.xlane.f32.xlu0 %v895
        %v897 = vpop.xlane.xlu0 %896
        %v898 = vsub.f32 %v866, %v894
        %v899 = vsub.f32 %v889, %v897
        %v900 = vmul.f32 %v898, 1.442695
        %v901 = vpow.pop %v900
        %v902 = vmul.f32 %v899, 1.442695
        %v903 = vpow.pop %v902
        %v904 = vsel %vm623, %v901, 0.0
        %905 = vadd.xlane.f32.xlu0 %v904
        %v906 = vpop.xlane.xlu0 %905
        %v907 = vsel %vm623, %v903, 0.0
        %908 = vadd.xlane.f32.xlu0 %v907
        %v909 = vpop.xlane.xlu0 %908
        %v910 = vrcp.pop %v906
        %v911 = vrcp.pop %v909
        %v912 = vmul.f32 %v901, %v910
        %v913 = vmul.f32 %v903, %v911
        %v914 = vpack.c.bf16 %v912, %v912
        %v915 = vpack.c.bf16 %v913, %v913
        %916 = vrot.lane.b32.xlu0 %v620, 48
        %v917 = vpop.permute.xlu0 %916
        %v919 = vsel %vm623, %v914, 0
        %v922 = vsel %vm696, %v917, 0
        %924 = vmatpush.bf16.msra.mxu0 0
        %925 = vmatpush.bf16.msra.mxu0 0
        %926 = vmatpush.bf16.msra.mxu0 0
        %927 = vmatpush.bf16.msra.mxu0 0
        %928 = vmatpush.bf16.msra.mxu0 0
        %929 = vmatpush.bf16.msra.mxu0 0
        %930 = vmatpush.bf16.msra.mxu0 0
        %931 = vmatpush.bf16.msra.mxu0 %v922
        %932 = vmatmul.bf16.gmra.mxu0 %v919
        %v933 = vpop.f32.mrf.mxu0
        %v934 = vadd.f32 0.0, %v933
        %v935 = vpop.f32.mrf.mxu0
        %936 = vdwg.mxu0
        %937 = vrot.lane.b32.xlu0 %v645, 48
        %v938 = vpop.permute.xlu0 %937
        %v940 = vsel %vm623, %v915, 0
        %v943 = vsel %vm696, %v938, 0
        %945 = vmatpush.bf16.msra.mxu0 0
        %946 = vmatpush.bf16.msra.mxu0 0
        %947 = vmatpush.bf16.msra.mxu0 0
        %948 = vmatpush.bf16.msra.mxu0 0
        %949 = vmatpush.bf16.msra.mxu0 0
        %950 = vmatpush.bf16.msra.mxu0 0
        %951 = vmatpush.bf16.msra.mxu0 0
        %952 = vmatpush.bf16.msra.mxu0 %v943
        %953 = vmatmul.bf16.gmra.mxu0 %v940
        %v954 = vpop.f32.mrf.mxu0
        %v955 = vadd.f32 0.0, %v954
        %v956 = vpop.f32.mrf.mxu0
        %957 = vdwg.mxu0
        %958 = vrot.lane.b32.xlu0 %v620, 104
        %v959 = vpop.permute.xlu0 %958
        %960 = vrot.lane.b32.xlu0 %v620, 72
        %v961 = vpop.permute.xlu0 %960
        %v963 = vsel %vm623, %v959, 0
        %v966 = vsel %vm623, %v961, 0
        %968 = vmatpush.bf16.xpose.msra.mxu0 0
        %969 = vmatpush.bf16.xpose.msra.mxu0 0
        %970 = vmatpush.bf16.xpose.msra.mxu0 0
        %971 = vmatpush.bf16.xpose.msra.mxu0 0
        %972 = vmatpush.bf16.xpose.msra.mxu0 0
        %973 = vmatpush.bf16.xpose.msra.mxu0 0
        %974 = vmatpush.bf16.xpose.msra.mxu0 0
        %975 = vmatpush.bf16.xpose.msra.mxu0 %v966
        %976 = vmatmul.bf16.gmra.mxu0 %v963
        %v977 = vpop.f32.mrf.mxu0
        %v978 = vadd.f32 %v614, %v977
        %v979 = vpop.f32.mrf.mxu0
        %980 = vdwg.mxu0
        %981 = vrot.lane.b32.xlu0 %v645, 104
        %v982 = vpop.permute.xlu0 %981
        %983 = vrot.lane.b32.xlu0 %v645, 72
        %v984 = vpop.permute.xlu0 %983
        %v986 = vsel %vm623, %v982, 0
        %v989 = vsel %vm623, %v984, 0
        %991 = vmatpush.bf16.xpose.msra.mxu0 0
        %992 = vmatpush.bf16.xpose.msra.mxu0 0
        %993 = vmatpush.bf16.xpose.msra.mxu0 0
        %994 = vmatpush.bf16.xpose.msra.mxu0 0
        %995 = vmatpush.bf16.xpose.msra.mxu0 0
        %996 = vmatpush.bf16.xpose.msra.mxu0 0
        %997 = vmatpush.bf16.xpose.msra.mxu0 0
        %998 = vmatpush.bf16.xpose.msra.mxu0 %v989
        %999 = vmatmul.bf16.gmra.mxu0 %v986
        %v1000 = vpop.f32.mrf.mxu0
        %v1001 = vadd.f32 %v615, %v1000
        %v1002 = vpop.f32.mrf.mxu0
        %1003 = vdwg.mxu0
        %v1004 = vsel %vm623, %v978, -inf
        %1005 = vmax.xlane.f32.xlu0 %v1004
        %v1006 = vpop.xlane.xlu0 %1005
        %v1007 = vsel %vm623, %v1001, -inf
        %1008 = vmax.xlane.f32.xlu0 %v1007
        %v1009 = vpop.xlane.xlu0 %1008
        %v1010 = vsub.f32 %v978, %v1006
        %v1011 = vsub.f32 %v1001, %v1009
        %v1012 = vmul.f32 %v1010, 1.442695
        %v1013 = vpow.pop %v1012
        %v1014 = vmul.f32 %v1011, 1.442695
        %v1015 = vpow.pop %v1014
        %v1016 = vsel %vm623, %v1013, 0.0
        %1017 = vadd.xlane.f32.xlu0 %v1016
        %v1018 = vpop.xlane.xlu0 %1017
        %v1019 = vsel %vm623, %v1015, 0.0
        %1020 = vadd.xlane.f32.xlu0 %v1019
        %v1021 = vpop.xlane.xlu0 %1020
        %v1022 = vrcp.pop %v1018
        %v1023 = vrcp.pop %v1021
        %v1024 = vmul.f32 %v1013, %v1022
        %v1025 = vmul.f32 %v1015, %v1023
        %v1026 = vpack.c.bf16 %v1024, %v1024
        %v1027 = vpack.c.bf16 %v1025, %v1025
        %1028 = vrot.lane.b32.xlu0 %v620, 40
        %v1029 = vpop.permute.xlu0 %1028
        %v1031 = vsel %vm623, %v1026, 0
        %v1034 = vsel %vm696, %v1029, 0
        %1036 = vmatpush.bf16.msra.mxu0 0
        %1037 = vmatpush.bf16.msra.mxu0 0
        %1038 = vmatpush.bf16.msra.mxu0 0
        %1039 = vmatpush.bf16.msra.mxu0 0
        %1040 = vmatpush.bf16.msra.mxu0 0
        %1041 = vmatpush.bf16.msra.mxu0 0
        %1042 = vmatpush.bf16.msra.mxu0 0
        %1043 = vmatpush.bf16.msra.mxu0 %v1034
        %1044 = vmatmul.bf16.gmra.mxu0 %v1031
        %v1045 = vpop.f32.mrf.mxu0
        %v1046 = vadd.f32 0.0, %v1045
        %v1047 = vpop.f32.mrf.mxu0
        %1048 = vdwg.mxu0
        %1049 = vrot.lane.b32.xlu0 %v645, 40
        %v1050 = vpop.permute.xlu0 %1049
        %v1052 = vsel %vm623, %v1027, 0
        %v1055 = vsel %vm696, %v1050, 0
        %1057 = vmatpush.bf16.msra.mxu0 0
        %1058 = vmatpush.bf16.msra.mxu0 0
        %1059 = vmatpush.bf16.msra.mxu0 0
        %1060 = vmatpush.bf16.msra.mxu0 0
        %1061 = vmatpush.bf16.msra.mxu0 0
        %1062 = vmatpush.bf16.msra.mxu0 0
        %1063 = vmatpush.bf16.msra.mxu0 0
        %1064 = vmatpush.bf16.msra.mxu0 %v1055
        %1065 = vmatmul.bf16.gmra.mxu0 %v1052
        %v1066 = vpop.f32.mrf.mxu0
        %v1067 = vadd.f32 0.0, %v1066
        %v1068 = vpop.f32.mrf.mxu0
        %1069 = vdwg.mxu0
        %1072 = vrot.lane.b32.xlu0 %v822, 8
        %v1073 = vpop.permute.xlu0 %1072
        %1074 = vrot.lane.b32.xlu0 %v843, 8
        %v1075 = vpop.permute.xlu0 %1074
        %1080 = vrot.lane.b32.xlu0 %v934, 16
        %v1081 = vpop.permute.xlu0 %1080
        %1082 = vrot.lane.b32.xlu0 %v955, 16
        %v1083 = vpop.permute.xlu0 %1082
        %1088 = vrot.lane.b32.xlu0 %v1046, 24
        %v1089 = vpop.permute.xlu0 %1088
        %1090 = vrot.lane.b32.xlu0 %v1067, 24
        %v1091 = vpop.permute.xlu0 %1090
        %v1094 = vsel %vm623, %v710, %v1073
        %v1095 = vsel %vm623, %v731, %v1075
        %vm1096 = vcmask 130048
        %v1097 = vsel %vm1096, %v1094, %v1081
        %v1098 = vsel %vm1096, %v1095, %v1083
        %vm1099 = vcmask 195584
        %v1100 = vsel %vm1099, %v1097, %v1089
        %v1101 = vsel %vm1099, %v1098, %v1091
        %v1102 = vpack.c.bf16 %v1101, %v1100
        %v1103 = vld [vmem:[%s532] sm:$0xf]
        %v1104 = vld [vmem:[%s532 + $0x4] sm:$0xf]
        %v1105 = vld [vmem:[%s532 + $0x8] sm:$0xf]
        %v1106 = vld [vmem:[%s532 + $0xc] sm:$0xf]
        %v1111 = vunpack.c.l.b16 %v1103
        %v1112 = vunpack.c.l.b16 %v1104
        %v1113 = vunpack.c.l.b16 %v1105
        %v1114 = vunpack.c.l.b16 %v1106
        %v1115 = vpack.c.b16 %v1112, %v1111
        %v1116 = vpack.c.b16 %v1114, %v1113
        %v1120 = vsel %vm592, %v1102, 0
        %1122 = vmatpush.bf16.msra.mxu0 0
        %1123 = vmatpush.bf16.msra.mxu0 0
        %1124 = vmatpush.bf16.msra.mxu0 0
        %1125 = vmatpush.bf16.msra.mxu0 0
        %1126 = vmatpush.bf16.msra.mxu0 0
        %1127 = vmatpush.bf16.msra.mxu0 0
        %1128 = vmatpush.bf16.msra.mxu0 %v1116
        %1129 = vmatpush.bf16.msra.mxu0 %v1115
        %1130 = vmatmul.bf16.gmra.mxu0 %v1120
        %v1131 = vpop.f32.mrf.mxu0
        %v1132 = vadd.f32 0.0, %v1131
        %v1133 = vpop.f32.mrf.mxu0
        %v1134 = vadd.f32 0.0, %v1133
        %1135 = vdwg.mxu0
        %v1136 = vadd.f32 %v571, %v1132
        %v1137 = vadd.f32 %v572, %v1134
        %v1138 = vld [vmem:[%s535] sm:$0x1]
        %v1139 = vld [vmem:[%s538] sm:$0x1]
        %v1140 = vsel %vm592, %v1136, 0.0
        %1141 = vadd.xlane.f32.xlu0 %v1140
        %v1142 = vpop.xlane.xlu0 %1141
        %v1143 = vsel %vm592, %v1137, 0.0
        %1144 = vadd.xlane.f32.xlu0 %v1143
        %v1145 = vpop.xlane.xlu0 %1144
        %v1146 = vrcp.pop 32.0
        %v1147 = vmul.f32 32.0, %v1146
        %v1148 = vsub.f32 1.0, %v1147
        %v1149 = vmul.f32 %v1146, %v1148
        %v1150 = vadd.f32 %v1146, %v1149
        %vm1151 = vweird.f32 %v1146
        %v1152 = vsel %vm1151, %v1146, %v1150
        %v1153 = vmul.f32 %v1142, %v1152
        %v1154 = vmul.f32 %v1145, %v1152
        %v1155 = vsub.f32 %v1136, %v1153
        %v1156 = vsub.f32 %v1137, %v1154
        %v1157 = vmul.f32 %v1155, %v1155
        %v1158 = vmul.f32 %v1156, %v1156
        %v1159 = vsel %vm592, %v1157, 0.0
        %1160 = vadd.xlane.f32.xlu0 %v1159
        %v1161 = vpop.xlane.xlu0 %1160
        %v1162 = vsel %vm592, %v1158, 0.0
        %1163 = vadd.xlane.f32.xlu0 %v1162
        %v1164 = vpop.xlane.xlu0 %1163
        %v1165 = vmul.f32 %v1161, %v1152
        %v1166 = vmul.f32 %v1164, %v1152
        %v1167 = vadd.f32 %v1165, 1e-05
        %v1168 = vadd.f32 %v1166, 1e-05
        %v1169 = vrsqrt.pop %v1167
        %v1170 = vmul.f32 %v1169, %v1167
        %v1171 = vmul.f32 %v1170, %v1169
        %v1172 = vmul.f32 0.5, %v1171
        %v1173 = vsub.f32 1.5, %v1172
        %v1174 = vmul.f32 %v1169, %v1173
        %vm1175 = vweird.f32 %v1167
        %vm1176 = vweird.f32 %v1169
        %vm1177 = vmor %vm1175, %vm1176
        %v1178 = vsel %vm1177, %v1169, %v1174
        %v1179 = vrsqrt.pop %v1168
        %v1180 = vmul.f32 %v1179, %v1168
        %v1181 = vmul.f32 %v1180, %v1179
        %v1182 = vmul.f32 0.5, %v1181
        %v1183 = vsub.f32 1.5, %v1182
        %v1184 = vmul.f32 %v1179, %v1183
        %vm1185 = vweird.f32 %v1168
        %vm1186 = vweird.f32 %v1179
        %vm1187 = vmor %vm1185, %vm1186
        %v1188 = vsel %vm1187, %v1179, %v1184
        %v1189 = vmul.f32 %v1155, %v1178
        %v1190 = vmul.f32 %v1156, %v1188
        %v1192 = vperm.slane %v1138, 0
        %v1194 = vmul.f32 %v1189, %v1192
        %v1195 = vmul.f32 %v1190, %v1192
        %v1197 = vperm.slane %v1139, 0
        %v1199 = vadd.f32 %v1194, %v1197
        %v1200 = vadd.f32 %v1195, %v1197
        %v1201 = vpack.c.bf16 %v1200, %v1199
        %v1202 = vld [vmem:[%s543] sm:$0xf]
        %v1203 = vld [vmem:[%s543 + $0x4] sm:$0xf]
        %v1204 = vld [vmem:[%s543 + $0x8] sm:$0xf]
        %v1205 = vld [vmem:[%s543 + $0xc] sm:$0xf]
        %v1206 = vld [vmem:[%s546] sm:$0x1]
        %v1208 = vperm.slane %v1206, 0
        %v1214 = vunpack.c.l.b16 %v1202
        %v1215 = vunpack.c.l.b16 %v1203
        %v1216 = vunpack.c.l.b16 %v1204
        %v1217 = vunpack.c.l.b16 %v1205
        %v1218 = vpack.c.b16 %v1215, %v1214
        %v1219 = vpack.c.b16 %v1217, %v1216
        %v1223 = vsel %vm592, %v1201, 0
        %1225 = vmatpush.bf16.msra.mxu0 0
        %1226 = vmatpush.bf16.msra.mxu0 0
        %1227 = vmatpush.bf16.msra.mxu0 0
        %1228 = vmatpush.bf16.msra.mxu0 0
        %1229 = vmatpush.bf16.msra.mxu0 0
        %1230 = vmatpush.bf16.msra.mxu0 0
        %1231 = vmatpush.bf16.msra.mxu0 %v1219
        %1232 = vmatpush.bf16.msra.mxu0 %v1218
        %1233 = vmatmul.bf16.gmra.mxu0 %v1223
        %v1234 = vpop.f32.mrf.mxu0
        %v1235 = vadd.f32 %v1208, %v1234
        %v1236 = vpop.f32.mrf.mxu0
        %v1237 = vadd.f32 %v1208, %v1236
        %1238 = vdwg.mxu0
        %v1239 = vmax.f32 %v1235, 0.0
        %v1240 = vmax.f32 %v1237, 0.0
        %v1241 = vpack.c.bf16 %v1240, %v1239
        %v1242 = vld [vmem:[%s551] sm:$0xf]
        %v1243 = vld [vmem:[%s551 + $0x4] sm:$0xf]
        %v1244 = vld [vmem:[%s551 + $0x8] sm:$0xf]
        %v1245 = vld [vmem:[%s551 + $0xc] sm:$0xf]
        %v1246 = vld [vmem:[%s551 + $0x10] sm:$0xf]
        %v1247 = vld [vmem:[%s551 + $0x14] sm:$0xf]
        %v1248 = vld [vmem:[%s551 + $0x18] sm:$0xf]
        %v1249 = vld [vmem:[%s551 + $0x1c] sm:$0xf]
        %v1250 = vld [vmem:[%s554] sm:$0x1]
        %v1252 = vperm.slane %v1250, 0
        %v1262 = vunpack.c.l.b16 %v1242
        %v1263 = vunpack.c.l.b16 %v1243
        %v1264 = vunpack.c.l.b16 %v1244
        %v1265 = vunpack.c.l.b16 %v1245
        %v1266 = vunpack.c.l.b16 %v1246
        %v1267 = vunpack.c.l.b16 %v1247
        %v1268 = vunpack.c.l.b16 %v1248
        %v1269 = vunpack.c.l.b16 %v1249
        %v1270 = vpack.c.b16 %v1263, %v1262
        %v1271 = vpack.c.b16 %v1265, %v1264
        %v1272 = vpack.c.b16 %v1267, %v1266
        %v1273 = vpack.c.b16 %v1269, %v1268
        %vm1278 = vcmask 523264
        %v1280 = vsel %vm1278, %v1241, 0
        %1282 = vmatpush.bf16.msra.mxu0 0
        %1283 = vmatpush.bf16.msra.mxu0 0
        %1284 = vmatpush.bf16.msra.mxu0 0
        %1285 = vmatpush.bf16.msra.mxu0 0
        %1286 = vmatpush.bf16.msra.mxu0 %v1273
        %1287 = vmatpush.bf16.msra.mxu0 %v1272
        %1288 = vmatpush.bf16.msra.mxu0 %v1271
        %1289 = vmatpush.bf16.msra.mxu0 %v1270
        %1290 = vmatmul.bf16.gmra.mxu0 %v1280
        %v1291 = vpop.f32.mrf.mxu0
        %v1292 = vadd.f32 %v1252, %v1291
        %v1293 = vpop.f32.mrf.mxu0
        %v1294 = vadd.f32 %v1252, %v1293
        %1295 = vdwg.mxu0
        %v1296 = vadd.f32 %v1199, %v1292
        %v1297 = vadd.f32 %v1200, %v1294
        %v1298 = vld [vmem:[%s557] sm:$0x1]
        %v1299 = vld [vmem:[%s560] sm:$0x1]
        %v1300 = vsel %vm592, %v1296, 0.0
        %1301 = vadd.xlane.f32.xlu0 %v1300
        %v1302 = vpop.xlane.xlu0 %1301
        %v1303 = vsel %vm592, %v1297, 0.0
        %1304 = vadd.xlane.f32.xlu0 %v1303
        %v1305 = vpop.xlane.xlu0 %1304
        %v1306 = vmul.f32 %v1302, %v1152
        %v1307 = vmul.f32 %v1305, %v1152
        %v1308 = vsub.f32 %v1296, %v1306
        %v1309 = vsub.f32 %v1297, %v1307
        %v1310 = vmul.f32 %v1308, %v1308
        %v1311 = vmul.f32 %v1309, %v1309
        %v1312 = vsel %vm592, %v1310, 0.0
        %1313 = vadd.xlane.f32.xlu0 %v1312
        %v1314 = vpop.xlane.xlu0 %1313
        %v1315 = vsel %vm592, %v1311, 0.0
        %1316 = vadd.xlane.f32.xlu0 %v1315
        %v1317 = vpop.xlane.xlu0 %1316
        %v1318 = vmul.f32 %v1314, %v1152
        %v1319 = vmul.f32 %v1317, %v1152
        %v1320 = vadd.f32 %v1318, 1e-05
        %v1321 = vadd.f32 %v1319, 1e-05
        %v1322 = vrsqrt.pop %v1320
        %v1323 = vmul.f32 %v1322, %v1320
        %v1324 = vmul.f32 %v1323, %v1322
        %v1325 = vmul.f32 0.5, %v1324
        %v1326 = vsub.f32 1.5, %v1325
        %v1327 = vmul.f32 %v1322, %v1326
        %vm1328 = vweird.f32 %v1320
        %vm1329 = vweird.f32 %v1322
        %vm1330 = vmor %vm1328, %vm1329
        %v1331 = vsel %vm1330, %v1322, %v1327
        %v1332 = vrsqrt.pop %v1321
        %v1333 = vmul.f32 %v1332, %v1321
        %v1334 = vmul.f32 %v1333, %v1332
        %v1335 = vmul.f32 0.5, %v1334
        %v1336 = vsub.f32 1.5, %v1335
        %v1337 = vmul.f32 %v1332, %v1336
        %vm1338 = vweird.f32 %v1321
        %vm1339 = vweird.f32 %v1332
        %vm1340 = vmor %vm1338, %vm1339
        %v1341 = vsel %vm1340, %v1332, %v1337
        %v1342 = vmul.f32 %v1308, %v1331
        %v1343 = vmul.f32 %v1309, %v1341
        %v1345 = vperm.slane %v1298, 0
        %v1347 = vmul.f32 %v1342, %v1345
        %v1348 = vmul.f32 %v1343, %v1345
        %v1350 = vperm.slane %v1299, 0
        %v1352 = vadd.f32 %v1347, %v1350
        %v1353 = vadd.f32 %v1348, %v1350
        %1354 = vst.msk [vmem:[#allocation5] sm:$0xff] %vm592, %v1352
        %1355 = vst.msk [vmem:[#allocation5 + $0x8] sm:$0xff] %vm592, %v1353
        // Predicated region
        $region77: #{transformer_encoder_forward.1} parent=67 // pred_check
          %p1356 = pneg %p340
        $region78: #{transformer_encoder_forward.1} parent=67 // pred_check_branch
          %1358 = sbr.rel (%p1356) target = $region80
        $region79: #{transformer_encoder_forward.1} parent=67 // pred_region
          %1360 = vsyncadd [#allocation4], 0
          %s1361 = sshll.u32 [#allocation5], 4
          %s1362 = int_to_ptr.vmem [resolvable:$true] %s1361
          %s1363 = sshll.u32 %s12, 4
          %s1364 = int_to_ptr.hbm [resolvable:$true] %s1363
          %1369 = dma.vmem_to_hbm [thread:$0]  %s1362, 256, %s1364, [#allocation4], 128, 128, 8
        $region80: #{transformer_encoder_forward.1} parent=67 // pred_fallthru
          _
        // Predicated region
        $region81: #{transformer_encoder_forward.1} parent=67 // pred_check
          %p1370 = pneg %p340
        $region82: #{transformer_encoder_forward.1} parent=67 // pred_check_branch
          %1372 = sbr.rel (%p1370) target = $region84
        $region83: #{transformer_encoder_forward.1} parent=67 // pred_region
          %1374 = dma.done [#allocation4], 256
        $region84: #{transformer_encoder_forward.1} parent=67 // pred_fallthru
          _
      $region68: #{transformer_encoder_forward.1} parent=5 // pred_fallthru
        _
      %p1375 = scmp.le.s32.totalorder 2, %s20
      // Predicated region
      $region85: #{transformer_encoder_forward.1} parent=5 // pred_check
        %p1376 = pneg %p1375
      $region86: #{transformer_encoder_forward.1} parent=5 // pred_check_branch
        %1378 = sbr.rel (%p1376) target = $region88
      $region87: #{transformer_encoder_forward.1} parent=5 // pred_region
        %s1379 = ssub.s32 %s20, 2
      $region88: #{transformer_encoder_forward.1} parent=5 // pred_fallthru
        _
    $region6: #{transformer_encoder_forward.1} parent=1 // loop_footer
      %s24 = sadd.s32 1, %s20
    $region7: #{transformer_encoder_forward.1} parent=1 // loop_footer_branch
      %19 = sbr.rel target = $region3
    $region8: #{transformer_encoder_forward.1} parent=1 // loop_exit
      _
    %1380 = vsyncpa [#allocation3], 1
    %s1381 = scalar_lea.sflag [#allocation3], 1
    %1382 = vsyncpa %s1381, 1
    %1383 = vsyncpa [#allocation4], 1
    %s1384 = scalar_lea.sflag [#allocation4], 1
    %1385 = vsyncpa %s1384, 1

</llo_original>
